<compile_context>
chip_gen: v5e
topology: v5e:2x2
jax: 0.10.0
libtpu: 0.0.40
codegen_flags: <defaults>
</compile_context>

<pallas_src>
import jax
import jax.numpy as jnp
from jax import lax
from jax.experimental import pallas as pl
from jax.experimental.pallas import tpu as pltpu

NUM_VQ = 2
N_E = 7        # codebook size (n_e)
E_DIM = 128    # e_dim (maps to the TPU lane dimension)
BETA = 0.25    # per-layer beta (VectorQuantizer_kmeans default)


def _round_up(x, m):
    return ((x + m - 1) // m) * m


def _choose_blocking(batch, max_block=512):
    """Returns (block_b, padded_batch)."""
    if batch <= 256:                        # small batch: one (8-aligned) block
        tb = max(8, _round_up(batch, 8))
        return tb, tb
    # Prefer lane-aligned blocks that divide the batch exactly AND give >= 2
    # grid steps (v7x: lets the "parallel" axis shard across both TensorCores).
    for tb in (max_block, 384, 256, 128):
        if batch % tb == 0 and batch // tb >= 2:
            return tb, batch
    if batch <= max_block:                  # no nice split: one padded block
        tb = _round_up(batch, 8)
        return tb, tb
    # Large awkward batches: pad+mask with the lane-aligned block of least waste.
    tb = min((max_block, 384, 256), key=lambda t: _round_up(batch, t))
    return tb, _round_up(batch, tb)


def _make_kernel(batch, block_b, padded):
    """Builds the per-block kernel. `batch`/`block_b`/`padded` are trace-time
    Python constants (no scalar prefetch needed)."""
    K = N_E
    K2 = 2 * K
    D = E_DIM

    def kernel(x_ref, cbf_ref, cbd_ref, g_ref, c2_ref, q_ref, idx_ref, stats_ref):
        # x_ref     : (TB, D)        f32   input rows for this block
        # cbf_ref   : (2K, D)        f32   stacked codebooks [cb0; cb1]
        # cbd_ref   : (2K, 2D)       f32   block-diagonal(cb0, cb1)
        # g_ref     : (2K, 2K)       f32   cb0 @ cb1^T zero-padded into lanes [K,2K)
        # c2_ref    : (1, 2K)        f32   ||c||^2 rows for both stages
        # q_ref     : (TB, 2D)       f32   concatenated quantized output
        # idx_ref   : (NUM_VQ, TB)   i32   lane-dense per-stage indices
        # stats_ref : (1, 1, 2K+2)   f32   [counts(2K), loss0, loss1]
        x = x_ref[...]
        c2 = c2_ref[...]

        # One fused distance matmul for both stages (contract D=128 once).
        # Per-row ||r||^2 is dropped: argmin-invariant; the loss is computed
        # directly from (r - q) below (no cancellation-prone reconstruction).
        xc = lax.dot_general(x, cbf_ref[...], (((1,), (1,)), ((), ())),
                             preferred_element_type=jnp.float32,
                             precision=lax.Precision.HIGHEST)      # (TB, 2K)
        d_base = c2 - 2.0 * xc                                      # (TB, 2K)

        lane = lax.broadcasted_iota(jnp.int32, (block_b, K2), 1)
        is_s0 = lane < K

        # ---- stage 0: argmin over lanes [0, K) ----
        d0 = jnp.where(is_s0, d_base, jnp.inf)
        m0 = jnp.min(d0, axis=1, keepdims=True)
        i0 = jnp.min(jnp.where(d0 == m0, lane, K2), axis=1, keepdims=True)
        oh0 = (lane == i0).astype(jnp.float32)                      # ones in [0,K)

        # ---- stage 1: scores adjusted by q0.cb1 = oh0 @ G (zero-padded into
        #      lanes [K,2K)); the residual never enters the MXU chain ----
        adj = lax.dot_general(oh0, g_ref[...], (((1,), (0,)), ((), ())),
                              preferred_element_type=jnp.float32,
                              precision=lax.Precision.HIGHEST)      # (TB, 2K)
        d1 = jnp.where(is_s0, jnp.inf, d_base + 2.0 * adj)
        m1 = jnp.min(d1, axis=1, keepdims=True)
        i1 = jnp.min(jnp.where(d1 == m1, lane, K2), axis=1, keepdims=True)
        oh1 = (lane == i1).astype(jnp.float32)                      # ones in [K,2K)

        oh_cat = oh0 + oh1                                          # (TB, 2K)

        # Fused block-diagonal codebook lookup -> single 256-lane slab store.
        q_cat = lax.dot_general(oh_cat, cbd_ref[...], (((1,), (0,)), ((), ())),
                                preferred_element_type=jnp.float32,
                                precision=lax.Precision.HIGHEST)    # (TB, 2D)
        q_ref[...] = q_cat

        # Lane-dense (NUM_VQ, TB) index rows via a tiny selector matmul
        # (exact: one-hot times small integers); one store for both stages.
        scol = lax.broadcasted_iota(jnp.int32, (NUM_VQ, K2), 1)
        srow = lax.broadcasted_iota(jnp.int32, (NUM_VQ, K2), 0)
        rel = scol - srow * K
        sel = jnp.where((rel >= 0) & (rel < K), rel, 0).astype(jnp.float32)
        idx_rows = lax.dot_general(sel, oh_cat, (((1,), (1,)), ((), ())),
                                   preferred_element_type=jnp.float32)  # (2, TB)
        idx_ref[...] = idx_rows.astype(jnp.int32)

        # Per-stage losses directly from (r - q): exact, no cancellation.
        diff0 = x - q_cat[:, :D]                                    # r0 - q0
        diff1 = diff0 - q_cat[:, D:]                                # r1 - q1
        l0 = jnp.sum(diff0 * diff0, axis=1, keepdims=True)          # (TB, 1)
        l1 = jnp.sum(diff1 * diff1, axis=1, keepdims=True)

        oh_stat = oh_cat
        if padded:  # mask padded rows out of counts / loss (static branch)
            rows = (lax.broadcasted_iota(jnp.int32, (block_b, 1), 0)
                    + pl.program_id(0) * block_b)
            valid = (rows < batch).astype(jnp.float32)              # (TB, 1)
            oh_stat = oh_cat * valid
            l0 = l0 * valid
            l1 = l1 * valid

        counts = jnp.sum(oh_stat, axis=0, keepdims=True)            # (1, 2K)
        loss0 = jnp.sum(l0, axis=0, keepdims=True)                  # (1, 1)
        loss1 = jnp.sum(l1, axis=0, keepdims=True)                  # (1, 1)
        stats_ref[0, :, :K2] = counts
        stats_ref[0, :, K2:K2 + 1] = loss0
        stats_ref[0, :, K2 + 1:K2 + 2] = loss1

    return kernel


def residual_vq2_forward(x, codebooks, block_b=None):
    """Pallas-backed forward of ResidualVQ2_kmeans (value semantics).

    Returns (final_quantized, total_vq_loss, indices_list, perplexities).
    """
    # TODO(synk): k-means codebook init / dead-code reset / usage-EMA buffer
    # updates and the straight-through-estimator gradient split are
    # training/host-side concerns; only forward values are implemented here.
    x = jnp.asarray(x, jnp.float32)
    codebooks = jnp.asarray(codebooks, jnp.float32)
    B, D = x.shape
    num_vq, K, d2 = codebooks.shape
    assert num_vq == NUM_VQ and K == N_E and D == E_DIM and d2 == E_DIM

    if block_b is None:
        block_b, b_pad = _choose_blocking(B)
    else:
        b_pad = _round_up(B, block_b)
    nb = b_pad // block_b
    assert block_b % 8 == 0 or nb == 1
    assert nb == 1 or block_b % 128 == 0, "multi-block grids need lane-aligned blocks"

    padded = b_pad != B
    x_in = jnp.pad(x, ((0, b_pad - B), (0, 0))) if padded else x

    K2 = 2 * K
    cb0, cb1 = codebooks[0], codebooks[1]
    cb_flat = codebooks.reshape(K2, D)
    # Block-diagonal codebook for the fused two-stage lookup.
    cb_diag = jnp.zeros((K2, NUM_VQ * D), jnp.float32)
    cb_diag = cb_diag.at[:K, :D].set(cb0).at[K:, D:].set(cb1)
    # G = cb0 @ cb1^T, zero-padded into the stage-1 lane block.
    g = jnp.dot(cb0, cb1.T, precision=lax.Precision.HIGHEST)
    g_full = jnp.zeros((K2, K2), jnp.float32).at[:K, K:].set(g)
    # ||c||^2 row for both stages (exact f32, computed once in the wrapper).
    c2 = jnp.sum(cb_flat * cb_flat, axis=1)[None, :]                # (1, 2K)

    kernel = _make_kernel(B, block_b, padded)
    q, idx, stats = pl.pallas_call(
        kernel,
        grid=(nb,),
        out_shape=(
            jax.ShapeDtypeStruct((b_pad, NUM_VQ * D), jnp.float32),
            jax.ShapeDtypeStruct((NUM_VQ, b_pad), jnp.int32),
            jax.ShapeDtypeStruct((nb, 1, K2 + 2), jnp.float32),
        ),
        in_specs=[
            pl.BlockSpec((block_b, D), lambda i: (i, 0)),
            pl.BlockSpec((K2, D), lambda i: (0, 0)),
            pl.BlockSpec((K2, NUM_VQ * D), lambda i: (0, 0)),
            pl.BlockSpec((K2, K2), lambda i: (0, 0)),
            pl.BlockSpec((1, K2), lambda i: (0, 0)),
        ],
        out_specs=(
            pl.BlockSpec((block_b, NUM_VQ * D), lambda i: (i, 0)),
            pl.BlockSpec((NUM_VQ, block_b), lambda i: (0, i)),
            pl.BlockSpec((1, 1, K2 + 2), lambda i: (i, 0, 0)),
        ),
        compiler_params=pltpu.CompilerParams(
            dimension_semantics=("parallel",)),
    )(x_in, cb_flat, cb_diag, g_full, c2)

    final_quantized = q[:B]                                # concatenated layout
    counts = jnp.sum(stats[:, 0, :K2], axis=0)             # (2K,) usage counts
    loss_sum = jnp.sum(stats[:, 0, K2:])                   # sum_v sum_b ||r-q||^2
    total_vq_loss = (1.0 + BETA) / float(B * D) * loss_sum
    perplexities = []
    indices_list = []
    for v in range(NUM_VQ):
        e_mean = counts[v * K:(v + 1) * K] / float(B)
        perplexities.append(jnp.exp(-jnp.sum(e_mean * jnp.log(e_mean + 1e-10))))
        indices_list.append(idx[v, :B].reshape(B, 1))      # (B, 1) int32 per stage
    return final_quantized, total_vq_loss, indices_list, perplexities


def residual_vq2_reference(x, codebooks):
    """Pure-JAX reference of the PyTorch forward (value semantics).

    The row-constant ||r||^2 term is dropped from the argmin distance (argmin-
    invariant; matches the kernel's formulation and avoids fp near-tie flips
    that adding a large constant to small per-code differences can cause)."""
    residual = x
    qs, idxs, losses, perps = [], [], [], []
    for v in range(NUM_VQ):
        cb = codebooks[v]
        d = (jnp.sum(cb ** 2, axis=1)[None, :]
             - 2.0 * jnp.dot(residual, cb.T, precision=lax.Precision.HIGHEST))
        idx = jnp.argmin(d, axis=1)
        q = cb[idx]
        losses.append((1.0 + BETA) * jnp.mean((residual - q) ** 2))
        oh = jax.nn.one_hot(idx, N_E, dtype=jnp.float32)
        e_mean = jnp.mean(oh, axis=0)
        perps.append(jnp.exp(-jnp.sum(e_mean * jnp.log(e_mean + 1e-10))))
        qs.append(q)
        idxs.append(idx[:, None].astype(jnp.int32))
        residual = residual - q
    return jnp.concatenate(qs, axis=1), sum(losses), idxs, perps


if __name__ == "__main__":
    key = jax.random.PRNGKey(0)
    kx1, kx2, kcb = jax.random.split(key, 3)
    # nn.Embedding init: uniform(-1/n_e, 1/n_e)
    codebooks = jax.random.uniform(kcb, (NUM_VQ, N_E, E_DIM),
                                   minval=-1.0 / N_E, maxval=1.0 / N_E,
                                   dtype=jnp.float32)

    # case 1: small batch -> single block, no padding
    B1 = 64
    x1 = jax.random.normal(kx1, (B1, E_DIM), dtype=jnp.float32)
    out1 = jax.block_until_ready(residual_vq2_forward(x1, codebooks))

    # case 2: multi-block grid (2 x 128-row blocks) with a padded + masked tail
    B2 = 200
    x2 = jax.random.normal(kx2, (B2, E_DIM), dtype=jnp.float32)
    out2 = jax.block_until_ready(residual_vq2_forward(x2, codebooks, block_b=128))

    for xs, out in ((x1, out1), (x2, out2)):
        final_q, total_loss, indices_list, perplexities = out
        ref_q, ref_loss, ref_idx, ref_perps = residual_vq2_reference(xs, codebooks)
        Bc = xs.shape[0]
        assert final_q.shape == (Bc, NUM_VQ * E_DIM)
        assert jnp.allclose(final_q, ref_q, atol=1e-4, rtol=1e-4)
        assert jnp.allclose(total_loss, ref_loss, atol=1e-4, rtol=1e-4)
        for i, ri in zip(indices_list, ref_idx):
            assert i.shape == (Bc, 1)
            assert jnp.array_equal(i, ri)
        for p, rp in zip(perplexities, ref_perps):
            assert jnp.allclose(p, rp, atol=1e-4, rtol=1e-4)

    print("KERNEL_OK")
</pallas_src>

<mosaic_0001>
module attributes {stable_mosaic.version = 11 : i64} {
  func.func @kernel(%arg0: i32, %arg1: memref<64x128xf32, #tpu.memory_space<vmem>>, %arg2: memref<14x128xf32, #tpu.memory_space<vmem>>, %arg3: memref<14x256xf32, #tpu.memory_space<vmem>>, %arg4: memref<14x14xf32, #tpu.memory_space<vmem>>, %arg5: memref<1x14xf32, #tpu.memory_space<vmem>>, %arg6: memref<64x256xf32, #tpu.memory_space<vmem>>, %arg7: memref<2x64xi32, #tpu.memory_space<vmem>>, %arg8: memref<1x1x16xf32, #tpu.memory_space<vmem>>) attributes {dimension_semantics = [#tpu.dimension_semantics<parallel>], iteration_bounds = array<i64: 1>, scalar_prefetch = 0 : i64, scratch_operands = 0 : i64, tpu.core_type = #tpu.core_type<tc>, window_params = [{transform_indices = @transform_0, window_bounds = array<i64: 64, 128>}, {pipeline_mode = #tpu.pipeline_mode<synchronous>, transform_indices = @transform_1, window_bounds = array<i64: 14, 128>}, {pipeline_mode = #tpu.pipeline_mode<synchronous>, transform_indices = @transform_2, window_bounds = array<i64: 14, 256>}, {pipeline_mode = #tpu.pipeline_mode<synchronous>, transform_indices = @transform_3, window_bounds = array<i64: 14, 14>}, {pipeline_mode = #tpu.pipeline_mode<synchronous>, transform_indices = @transform_4, window_bounds = array<i64: 1, 14>}, {transform_indices = @transform_5, window_bounds = array<i64: 64, 256>}, {transform_indices = @transform_6, window_bounds = array<i64: 2, 64>}, {transform_indices = @transform_7, window_bounds = array<i64: 1, 1, 16>}]} {
    %c0 = arith.constant 0 : index
    %c0_0 = arith.constant 0 : index
    %0 = vector.load %arg1[%c0, %c0_0] : memref<64x128xf32, #tpu.memory_space<vmem>>, vector<64x128xf32>
    %c0_1 = arith.constant 0 : index
    %c0_2 = arith.constant 0 : index
    %1 = vector.load %arg5[%c0_1, %c0_2] : memref<1x14xf32, #tpu.memory_space<vmem>>, vector<1x14xf32>
    %c0_3 = arith.constant 0 : index
    %c0_4 = arith.constant 0 : index
    %2 = vector.load %arg2[%c0_3, %c0_4] : memref<14x128xf32, #tpu.memory_space<vmem>>, vector<14x128xf32>
    %cst = arith.constant dense<0.000000e+00> : vector<64x14xf32>
    %3 = tpu.matmul %0, %2, %cst {dimension_numbers = #tpu.dot_dimension_numbers<[1], [1], [0], [0], [0, 0, 1, 0], [], []>, precision = #tpu.contract_precision<fp32>} : vector<64x128xf32>, vector<14x128xf32>, vector<64x14xf32> -> vector<64x14xf32>
    %cst_5 = arith.constant 2.000000e+00 : f32
    %4 = vector.broadcast %cst_5 : f32 to vector<64x14xf32>
    %5 = arith.mulf %4, %3 : vector<64x14xf32>
    %6 = vector.broadcast %1 : vector<1x14xf32> to vector<64x14xf32>
    %7 = arith.subf %6, %5 : vector<64x14xf32>
    %8 = tpu.iota {dimensions = array<i32: 1>} : vector<64x14xi32>
    %c7_i32 = arith.constant 7 : i32
    %9 = vector.broadcast %c7_i32 : i32 to vector<64x14xi32>
    %10 = arith.cmpi slt, %8, %9 : vector<64x14xi32>
    %cst_6 = arith.constant 0x7F800000 : f32
    %11 = vector.broadcast %cst_6 : f32 to vector<64x14xf32>
    %12 = arith.select %10, %7, %11 : vector<64x14xi1>, vector<64x14xf32>
    %cst_7 = arith.constant dense<0x7F800000> : vector<64xf32>
    %13 = vector.multi_reduction <minimumf>, %12, %cst_7 [1] : vector<64x14xf32> to vector<64xf32>
    %14 = vector.shape_cast %13 : vector<64xf32> to vector<64x1xf32>
    %15 = vector.broadcast %14 : vector<64x1xf32> to vector<64x14xf32>
    %16 = arith.cmpf oeq, %12, %15 : vector<64x14xf32>
    %c14_i32 = arith.constant 14 : i32
    %17 = vector.broadcast %c14_i32 : i32 to vector<64x14xi32>
    %18 = arith.select %16, %8, %17 : vector<64x14xi1>, vector<64x14xi32>
    %cst_8 = arith.constant dense<2147483647> : vector<64xi32>
    %19 = vector.multi_reduction <minsi>, %18, %cst_8 [1] : vector<64x14xi32> to vector<64xi32>
    %20 = vector.shape_cast %19 : vector<64xi32> to vector<64x1xi32>
    %21 = vector.broadcast %20 : vector<64x1xi32> to vector<64x14xi32>
    %22 = arith.cmpi eq, %8, %21 : vector<64x14xi32>
    %23 = arith.extui %22 : vector<64x14xi1> to vector<64x14xi32>
    %24 = arith.sitofp %23 : vector<64x14xi32> to vector<64x14xf32>
    %c0_9 = arith.constant 0 : index
    %c0_10 = arith.constant 0 : index
    %25 = vector.load %arg4[%c0_9, %c0_10] : memref<14x14xf32, #tpu.memory_space<vmem>>, vector<14x14xf32>
    %cst_11 = arith.constant dense<0.000000e+00> : vector<64x14xf32>
    %26 = tpu.matmul %24, %25, %cst_11 {dimension_numbers = #tpu.dot_dimension_numbers<[1], [0], [0], [1], [0, 0, 1, 1], [], []>, precision = #tpu.contract_precision<fp32>} : vector<64x14xf32>, vector<14x14xf32>, vector<64x14xf32> -> vector<64x14xf32>
    %cst_12 = arith.constant 2.000000e+00 : f32
    %27 = vector.broadcast %cst_12 : f32 to vector<64x14xf32>
    %28 = arith.mulf %27, %26 : vector<64x14xf32>
    %29 = arith.addf %7, %28 : vector<64x14xf32>
    %cst_13 = arith.constant 0x7F800000 : f32
    %30 = vector.broadcast %cst_13 : f32 to vector<64x14xf32>
    %31 = arith.select %10, %30, %29 : vector<64x14xi1>, vector<64x14xf32>
    %cst_14 = arith.constant dense<0x7F800000> : vector<64xf32>
    %32 = vector.multi_reduction <minimumf>, %31, %cst_14 [1] : vector<64x14xf32> to vector<64xf32>
    %33 = vector.shape_cast %32 : vector<64xf32> to vector<64x1xf32>
    %34 = vector.broadcast %33 : vector<64x1xf32> to vector<64x14xf32>
    %35 = arith.cmpf oeq, %31, %34 : vector<64x14xf32>
    %c14_i32_15 = arith.constant 14 : i32
    %36 = vector.broadcast %c14_i32_15 : i32 to vector<64x14xi32>
    %37 = arith.select %35, %8, %36 : vector<64x14xi1>, vector<64x14xi32>
    %cst_16 = arith.constant dense<2147483647> : vector<64xi32>
    %38 = vector.multi_reduction <minsi>, %37, %cst_16 [1] : vector<64x14xi32> to vector<64xi32>
    %39 = vector.shape_cast %38 : vector<64xi32> to vector<64x1xi32>
    %40 = vector.broadcast %39 : vector<64x1xi32> to vector<64x14xi32>
    %41 = arith.cmpi eq, %8, %40 : vector<64x14xi32>
    %42 = arith.extui %41 : vector<64x14xi1> to vector<64x14xi32>
    %43 = arith.sitofp %42 : vector<64x14xi32> to vector<64x14xf32>
    %44 = arith.addf %24, %43 : vector<64x14xf32>
    %c0_17 = arith.constant 0 : index
    %c0_18 = arith.constant 0 : index
    %45 = vector.load %arg3[%c0_17, %c0_18] : memref<14x256xf32, #tpu.memory_space<vmem>>, vector<14x256xf32>
    %cst_19 = arith.constant dense<0.000000e+00> : vector<64x256xf32>
    %46 = tpu.matmul %44, %45, %cst_19 {dimension_numbers = #tpu.dot_dimension_numbers<[1], [0], [0], [1], [0, 0, 1, 1], [], []>, precision = #tpu.contract_precision<fp32>} : vector<64x14xf32>, vector<14x256xf32>, vector<64x256xf32> -> vector<64x256xf32>
    %c0_20 = arith.constant 0 : index
    %c0_21 = arith.constant 0 : index
    %47 = vector.load %arg6[%c0_20, %c0_21] : memref<64x256xf32, #tpu.memory_space<vmem>>, vector<64x256xf32>
    tpu.vector_store %arg6[%c0_20, %c0_21], %46 {strides = array<i32>} : memref<64x256xf32, #tpu.memory_space<vmem>>, vector<64x256xf32>,
    %48 = tpu.iota {dimensions = array<i32: 1>} : vector<2x14xi32>
    %49 = tpu.iota {dimensions = array<i32: 0>} : vector<2x14xi32>
    %c7_i32_22 = arith.constant 7 : i32
    %50 = vector.broadcast %c7_i32_22 : i32 to vector<2x14xi32>
    %51 = arith.muli %49, %50 : vector<2x14xi32>
    %52 = arith.subi %48, %51 : vector<2x14xi32>
    %c0_i32 = arith.constant 0 : i32
    %53 = vector.broadcast %c0_i32 : i32 to vector<2x14xi32>
    %54 = arith.cmpi sge, %52, %53 : vector<2x14xi32>
    %c7_i32_23 = arith.constant 7 : i32
    %55 = vector.broadcast %c7_i32_23 : i32 to vector<2x14xi32>
    %56 = arith.cmpi slt, %52, %55 : vector<2x14xi32>
    %57 = arith.andi %54, %56 : vector<2x14xi1>
    %c0_i32_24 = arith.constant 0 : i32
    %58 = vector.broadcast %c0_i32_24 : i32 to vector<2x14xi32>
    %59 = arith.select %57, %52, %58 : vector<2x14xi1>, vector<2x14xi32>
    %60 = arith.sitofp %59 : vector<2x14xi32> to vector<2x14xf32>
    %cst_25 = arith.constant dense<0.000000e+00> : vector<2x64xf32>
    %61 = tpu.matmul %60, %44, %cst_25 {dimension_numbers = #tpu.dot_dimension_numbers<[1], [1], [0], [0], [0, 0, 1, 0], [], []>} : vector<2x14xf32>, vector<64x14xf32>, vector<2x64xf32> -> vector<2x64xf32>
    %62 = arith.fptosi %61 : vector<2x64xf32> to vector<2x64xi32>
    %c0_26 = arith.constant 0 : index
    %c0_27 = arith.constant 0 : index
    %63 = vector.load %arg7[%c0_26, %c0_27] : memref<2x64xi32, #tpu.memory_space<vmem>>, vector<2x64xi32>
    tpu.vector_store %arg7[%c0_26, %c0_27], %62 {strides = array<i32>} : memref<2x64xi32, #tpu.memory_space<vmem>>, vector<2x64xi32>,
    %64 = vector.extract_strided_slice %46 {offsets = [0, 0], sizes = [64, 128], strides = [1, 1]} : vector<64x256xf32> to vector<64x128xf32>
    %65 = arith.subf %0, %64 : vector<64x128xf32>
    %66 = vector.extract_strided_slice %46 {offsets = [0, 128], sizes = [64, 128], strides = [1, 1]} : vector<64x256xf32> to vector<64x128xf32>
    %67 = arith.subf %65, %66 : vector<64x128xf32>
    %68 = arith.mulf %65, %65 : vector<64x128xf32>
    %cst_28 = arith.constant dense<0.000000e+00> : vector<64xf32>
    %69 = vector.multi_reduction <add>, %68, %cst_28 [1] : vector<64x128xf32> to vector<64xf32>
    %70 = vector.shape_cast %69 : vector<64xf32> to vector<64x1xf32>
    %71 = arith.mulf %67, %67 : vector<64x128xf32>
    %cst_29 = arith.constant dense<0.000000e+00> : vector<64xf32>
    %72 = vector.multi_reduction <add>, %71, %cst_29 [1] : vector<64x128xf32> to vector<64xf32>
    %73 = vector.shape_cast %72 : vector<64xf32> to vector<64x1xf32>
    %cst_30 = arith.constant dense<0.000000e+00> : vector<14xf32>
    %74 = vector.multi_reduction <add>, %44, %cst_30 [0] : vector<64x14xf32> to vector<14xf32>
    %75 = vector.shape_cast %74 : vector<14xf32> to vector<1x14xf32>
    %cst_31 = arith.constant dense<0.000000e+00> : vector<1xf32>
    %76 = vector.multi_reduction <add>, %70, %cst_31 [0] : vector<64x1xf32> to vector<1xf32>
    %77 = vector.shape_cast %76 : vector<1xf32> to vector<1x1xf32>
    %cst_32 = arith.constant dense<0.000000e+00> : vector<1xf32>
    %78 = vector.multi_reduction <add>, %73, %cst_32 [0] : vector<64x1xf32> to vector<1xf32>
    %79 = vector.shape_cast %78 : vector<1xf32> to vector<1x1xf32>
    %c0_33 = arith.constant 0 : index
    %c0_34 = arith.constant 0 : index
    %c0_35 = arith.constant 0 : index
    %80 = vector.load %arg8[%c0_33, %c0_34, %c0_35] : memref<1x1x16xf32, #tpu.memory_space<vmem>>, vector<1x1x14xf32>
    %81 = vector.shape_cast %80 : vector<1x1x14xf32> to vector<1x14xf32>
    %82 = vector.shape_cast %75 : vector<1x14xf32> to vector<1x1x14xf32>
    tpu.vector_store %arg8[%c0_33, %c0_34, %c0_35], %82 {strides = array<i32>} : memref<1x1x16xf32, #tpu.memory_space<vmem>>, vector<1x1x14xf32>,
    %c0_36 = arith.constant 0 : index
    %c0_37 = arith.constant 0 : index
    %c14 = arith.constant 14 : index
    %83 = vector.load %arg8[%c0_36, %c0_37, %c14] : memref<1x1x16xf32, #tpu.memory_space<vmem>>, vector<1x1x1xf32>
    %84 = vector.shape_cast %83 : vector<1x1x1xf32> to vector<1x1xf32>
    %85 = vector.shape_cast %77 : vector<1x1xf32> to vector<1x1x1xf32>
    tpu.vector_store %arg8[%c0_36, %c0_37, %c14], %85 {strides = array<i32>} : memref<1x1x16xf32, #tpu.memory_space<vmem>>, vector<1x1x1xf32>,
    %c0_38 = arith.constant 0 : index
    %c0_39 = arith.constant 0 : index
    %c15 = arith.constant 15 : index
    %86 = vector.load %arg8[%c0_38, %c0_39, %c15] : memref<1x1x16xf32, #tpu.memory_space<vmem>>, vector<1x1x1xf32>
    %87 = vector.shape_cast %86 : vector<1x1x1xf32> to vector<1x1xf32>
    %88 = vector.shape_cast %79 : vector<1x1xf32> to vector<1x1x1xf32>
    tpu.vector_store %arg8[%c0_38, %c0_39, %c15], %88 {strides = array<i32>} : memref<1x1x16xf32, #tpu.memory_space<vmem>>, vector<1x1x1xf32>,
    return
  }
  func.func @transform_0(%arg0: i32) -> (i32, i32) {
    %c0_i32 = arith.constant 0 : i32
    %c0_i32_0 = arith.constant 0 : i32
    return %arg0, %c0_i32 : i32, i32
  }
  func.func @transform_1(%arg0: i32) -> (i32, i32) {
    %c0_i32 = arith.constant 0 : i32
    %c0_i32_0 = arith.constant 0 : i32
    %c0_i32_1 = arith.constant 0 : i32
    return %c0_i32, %c0_i32_0 : i32, i32
  }
  func.func @transform_2(%arg0: i32) -> (i32, i32) {
    %c0_i32 = arith.constant 0 : i32
    %c0_i32_0 = arith.constant 0 : i32
    %c0_i32_1 = arith.constant 0 : i32
    return %c0_i32, %c0_i32_0 : i32, i32
  }
  func.func @transform_3(%arg0: i32) -> (i32, i32) {
    %c0_i32 = arith.constant 0 : i32
    %c0_i32_0 = arith.constant 0 : i32
    %c0_i32_1 = arith.constant 0 : i32
    return %c0_i32, %c0_i32_0 : i32, i32
  }
  func.func @transform_4(%arg0: i32) -> (i32, i32) {
    %c0_i32 = arith.constant 0 : i32
    %c0_i32_0 = arith.constant 0 : i32
    %c0_i32_1 = arith.constant 0 : i32
    return %c0_i32, %c0_i32_0 : i32, i32
  }
  func.func @transform_5(%arg0: i32) -> (i32, i32) {
    %c0_i32 = arith.constant 0 : i32
    %c0_i32_0 = arith.constant 0 : i32
    return %arg0, %c0_i32 : i32, i32
  }
  func.func @transform_6(%arg0: i32) -> (i32, i32) {
    %c0_i32 = arith.constant 0 : i32
    %c0_i32_0 = arith.constant 0 : i32
    return %c0_i32, %arg0 : i32, i32
  }
  func.func @transform_7(%arg0: i32) -> (i32, i32, i32) {
    %c0_i32 = arith.constant 0 : i32
    %c0_i32_0 = arith.constant 0 : i32
    %c0_i32_1 = arith.constant 0 : i32
    return %arg0, %c0_i32, %c0_i32_0 : i32, i32, i32
  }
}

</mosaic_0001>

<llo_original>
// kernel: tpu_custom_call.1
$region0: #{tpu_custom_call.1}
  #allocation0 [shape = 'u32[]', space=smem, size = 0x4, offset = 0x4, fixed_abs, tag = 'smem constant byte address 0x4 - core index']
  #allocation1 [shape = 'u32[72,128]{1,0:T(1,128)}', space=vmem, size = 0x9000, scoped, tag = 'internal scratch']
  %s0 = inlined_call_operand.hbm [shape: f32[64,128], index: 0, kind: input, shape index: {}]
  %s1 = inlined_call_operand.hbm [shape: f32[14,128], index: 1, kind: input, shape index: {}]
  %s2 = inlined_call_operand.hbm [shape: f32[14,256], index: 2, kind: input, shape index: {}]
  %s3 = inlined_call_operand.hbm [shape: f32[14,14], index: 3, kind: input, shape index: {}]
  %s4 = inlined_call_operand.vmem [shape: f32[1,14], index: 4, kind: input, shape index: {}]
  %s5 = inlined_call_operand.hbm [shape: f32[64,256], index: 5, kind: output, shape index: {0}]
  %s6 = inlined_call_operand.hbm [shape: s32[2,64], index: 6, kind: output, shape index: {1}]
  %s7 = inlined_call_operand.hbm [shape: f32[1,1,16], index: 7, kind: output, shape index: {2}]
  %8 = xla_tuple %s5, %s6, %s7
  %s9 = sld [smem:[#allocation0]]
  $region62: #{tpu_custom_call.1} parent=0
    _
  %s11 = ssub.s32 1, %s9
  %s12 = scalar_select 0, %s11, %s9
  $region1: #{tpu_custom_call.1} parent=0
    #allocation2 [shape = 'u8[32768]{0}', space=vmem, size = 0x8000, scoped, tag = 'input window, operand 0, single buffered']
    #allocation3 [shape = 's32[1]{0}', space=sflag, size = 0x4, scoped, tag = 'scoped memory for tpu_custom_call.1']
    #allocation4 [shape = 's32[1]{0}', space=sflag, size = 0x4, scoped, tag = 'scoped memory for tpu_custom_call.1']
    #allocation5 [shape = 'u8[8192]{0}', space=vmem, size = 0x2000, scoped, tag = 'input window, operand 1, single buffered']
    #allocation6 [shape = 's32[1]{0}', space=sflag, size = 0x4, scoped, tag = 'scoped memory for tpu_custom_call.1']
    #allocation7 [shape = 'u8[16384]{0}', space=vmem, size = 0x4000, scoped, tag = 'input window, operand 2, single buffered']
    #allocation8 [shape = 'u8[8192]{0}', space=vmem, size = 0x2000, scoped, tag = 'input window, operand 3, single buffered']
    #allocation9 [shape = 's32[1]{0}', space=sflag, size = 0x4, scoped, tag = 'scoped memory for tpu_custom_call.1']
    #allocation10 [shape = 'u8[65536]{0}', space=vmem, size = 0x10000, scoped, tag = 'output window, operand 0, single buffered']
    #allocation11 [shape = 'u8[1024]{0}', space=vmem, size = 0x400, scoped, tag = 'output window, operand 1, single buffered']
    #allocation12 [shape = 's32[1]{0}', space=sflag, size = 0x4, scoped, tag = 'scoped memory for tpu_custom_call.1']
    #allocation13 [shape = 'u8[512]{0}', space=vmem, size = 0x400, scoped, tag = 'output window, operand 2, single buffered']
    %13 = vsyncpa [#allocation3], 0
    %14 = vsyncpa [#allocation6], 0
    %15 = vsyncpa [#allocation9], 0
    %16 = vsyncpa [#allocation4], 0
    %17 = vsyncpa [#allocation12], 0
    // Predicated region
    $region2: #{tpu_custom_call.1} parent=1 // pred_check
      _
    $region3: #{tpu_custom_call.1} parent=1 // pred_check_branch
      %19 = sbr.rel (0) target = $region5
    $region4: #{tpu_custom_call.1} parent=1 // pred_region
      %21 = vsyncadd [#allocation3], 0
      %s22 = sshll.u32 %s0, 4
      %s23 = int_to_ptr.hbm [resolvable:$true] %s22
      %s24 = sshll.u32 [#allocation2], 4
      %s25 = int_to_ptr.vmem [resolvable:$true] %s24
      %30 = dma.hbm_to_vmem [thread:$0]  %s23, 1024, %s25, [#allocation3], 128, 128, 8
    $region5: #{tpu_custom_call.1} parent=1 // pred_fallthru
      _
    // Predicated region
    $region6: #{tpu_custom_call.1} parent=1 // pred_check
      _
    $region7: #{tpu_custom_call.1} parent=1 // pred_check_branch
      %32 = sbr.rel (0) target = $region9
    $region8: #{tpu_custom_call.1} parent=1 // pred_region
      %34 = vsyncadd [#allocation6], 0
      %s35 = sshll.u32 %s1, 4
      %s36 = int_to_ptr.hbm [resolvable:$true] %s35
      %s37 = sshll.u32 [#allocation5], 4
      %s38 = int_to_ptr.vmem [resolvable:$true] %s37
      %43 = dma.hbm_to_vmem [thread:$0]  %s36, 256, %s38, [#allocation6], 128, 128, 8
    $region9: #{tpu_custom_call.1} parent=1 // pred_fallthru
      _
    // Predicated region
    $region10: #{tpu_custom_call.1} parent=1 // pred_check
      _
    $region11: #{tpu_custom_call.1} parent=1 // pred_check_branch
      %45 = sbr.rel (0) target = $region13
    $region12: #{tpu_custom_call.1} parent=1 // pred_region
      %47 = vsyncadd [#allocation6], 0
      %s48 = sshll.u32 %s2, 4
      %s49 = int_to_ptr.hbm [resolvable:$true] %s48
      %s50 = sshll.u32 [#allocation7], 4
      %s51 = int_to_ptr.vmem [resolvable:$true] %s50
      %56 = dma.hbm_to_vmem [thread:$0]  %s49, 512, %s51, [#allocation6], 256, 256, 16
    $region13: #{tpu_custom_call.1} parent=1 // pred_fallthru
      _
    // Predicated region
    $region14: #{tpu_custom_call.1} parent=1 // pred_check
      _
    $region15: #{tpu_custom_call.1} parent=1 // pred_check_branch
      %58 = sbr.rel (0) target = $region17
    $region16: #{tpu_custom_call.1} parent=1 // pred_region
      %60 = vsyncadd [#allocation9], 0
      %s61 = sshll.u32 %s3, 4
      %s62 = int_to_ptr.hbm [resolvable:$true] %s61
      %s63 = sshll.u32 [#allocation8], 4
      %s64 = int_to_ptr.vmem [resolvable:$true] %s63
      %69 = dma.hbm_to_vmem [thread:$0]  %s62, 256, %s64, [#allocation9], 128, 128, 8
    $region17: #{tpu_custom_call.1} parent=1 // pred_fallthru
      _
    // Predicated region
    $region18: #{tpu_custom_call.1} parent=1 // pred_check
      _
    $region19: #{tpu_custom_call.1} parent=1 // pred_check_branch
      %71 = sbr.rel (0) target = $region21
    $region20: #{tpu_custom_call.1} parent=1 // pred_region
      _
    $region21: #{tpu_custom_call.1} parent=1 // pred_fallthru
      _
    // Predicated region
    $region22: #{tpu_custom_call.1} parent=1 // pred_check
      _
    $region23: #{tpu_custom_call.1} parent=1 // pred_check_branch
      %73 = sbr.rel (0) target = $region25
    $region24: #{tpu_custom_call.1} parent=1 // pred_region
      %75 = dma.done [#allocation3], 1024
    $region25: #{tpu_custom_call.1} parent=1 // pred_fallthru
      _
    // Predicated region
    $region26: #{tpu_custom_call.1} parent=1 // pred_check
      _
    $region27: #{tpu_custom_call.1} parent=1 // pred_check_branch
      %77 = sbr.rel (0) target = $region29
    $region28: #{tpu_custom_call.1} parent=1 // pred_region
      %79 = dma.done [#allocation6], 256
    $region29: #{tpu_custom_call.1} parent=1 // pred_fallthru
      _
    // Predicated region
    $region30: #{tpu_custom_call.1} parent=1 // pred_check
      _
    $region31: #{tpu_custom_call.1} parent=1 // pred_check_branch
      %81 = sbr.rel (0) target = $region33
    $region32: #{tpu_custom_call.1} parent=1 // pred_region
      %83 = dma.done [#allocation6], 512
    $region33: #{tpu_custom_call.1} parent=1 // pred_fallthru
      _
    // Predicated region
    $region34: #{tpu_custom_call.1} parent=1 // pred_check
      _
    $region35: #{tpu_custom_call.1} parent=1 // pred_check_branch
      %85 = sbr.rel (0) target = $region37
    $region36: #{tpu_custom_call.1} parent=1 // pred_region
      %87 = dma.done [#allocation9], 256
    $region37: #{tpu_custom_call.1} parent=1 // pred_fallthru
      _
    %v88 = vld [vmem:[#allocation2] sm:$0xff]
    %v89 = vld [vmem:[#allocation2 + $0x8] sm:$0xff]
    %v90 = vld [vmem:[#allocation2 + $0x10] sm:$0xff]
    %v91 = vld [vmem:[#allocation2 + $0x18] sm:$0xff]
    %v92 = vld [vmem:[#allocation2 + $0x20] sm:$0xff]
    %v93 = vld [vmem:[#allocation2 + $0x28] sm:$0xff]
    %v94 = vld [vmem:[#allocation2 + $0x30] sm:$0xff]
    %v95 = vld [vmem:[#allocation2 + $0x38] sm:$0xff]
    %v96 = vld [vmem:[%s4] sm:$0x1]
    %v97 = vld [vmem:[#allocation5] sm:$0xff]
    %v98 = vld [vmem:[#allocation5 + $0x8] sm:$0x3f]
    %99 = vmatpush.xpose.msra.mxu0 0.0
    %100 = vmatpush.xpose.msra.mxu0 0.0
    %101 = vmatpush.xpose.msra.mxu0 0.0
    %102 = vmatpush.xpose.msra.mxu0 0.0
    %103 = vmatpush.xpose.msra.mxu0 0.0
    %104 = vmatpush.xpose.msra.mxu0 0.0
    %105 = vmatpush.xpose.msra.mxu0 0.0
    %106 = vmatpush.xpose.msra.mxu0 0.0
    %107 = vmatpush.xpose.msra.mxu0 0.0
    %108 = vmatpush.xpose.msra.mxu0 0.0
    %109 = vmatpush.xpose.msra.mxu0 0.0
    %110 = vmatpush.xpose.msra.mxu0 0.0
    %111 = vmatpush.xpose.msra.mxu0 0.0
    %112 = vmatpush.xpose.msra.mxu0 0.0
    %v113 = vand.u32 %v98, 4294901760
    %114 = vmatpush.xpose.msra.mxu0 %v113
    %v115 = vand.u32 %v97, 4294901760
    %116 = vmatpush.xpose.msra.mxu0 %v115
    %v117 = vand.u32 %v88, 4294901760
    %v118 = vsub.f32 %v88, %v117
    %v119 = vand.u32 %v118, 4294901760
    %v120 = vsub.f32 %v118, %v119
    %v121 = vand.u32 %v120, 4294901760
    %122 = vmatmul.f32.gmra.mxu0 %v121
    %v123 = vpop.f32.mrf.mxu0
    %v124 = vadd.f32 0.0, %v123
    %v125 = vand.u32 %v89, 4294901760
    %v126 = vsub.f32 %v89, %v125
    %v127 = vand.u32 %v126, 4294901760
    %v128 = vsub.f32 %v126, %v127
    %v129 = vand.u32 %v128, 4294901760
    %130 = vmatmul.f32.gmra.mxu0 %v129
    %v131 = vpop.f32.mrf.mxu0
    %v132 = vadd.f32 0.0, %v131
    %v133 = vand.u32 %v90, 4294901760
    %v134 = vsub.f32 %v90, %v133
    %v135 = vand.u32 %v134, 4294901760
    %v136 = vsub.f32 %v134, %v135
    %v137 = vand.u32 %v136, 4294901760
    %138 = vmatmul.f32.gmra.mxu0 %v137
    %v139 = vpop.f32.mrf.mxu0
    %v140 = vadd.f32 0.0, %v139
    %v141 = vand.u32 %v91, 4294901760
    %v142 = vsub.f32 %v91, %v141
    %v143 = vand.u32 %v142, 4294901760
    %v144 = vsub.f32 %v142, %v143
    %v145 = vand.u32 %v144, 4294901760
    %146 = vmatmul.f32.gmra.mxu0 %v145
    %v147 = vpop.f32.mrf.mxu0
    %v148 = vadd.f32 0.0, %v147
    %v149 = vand.u32 %v92, 4294901760
    %v150 = vsub.f32 %v92, %v149
    %v151 = vand.u32 %v150, 4294901760
    %v152 = vsub.f32 %v150, %v151
    %v153 = vand.u32 %v152, 4294901760
    %154 = vmatmul.f32.gmra.mxu0 %v153
    %v155 = vpop.f32.mrf.mxu0
    %v156 = vadd.f32 0.0, %v155
    %v157 = vand.u32 %v93, 4294901760
    %v158 = vsub.f32 %v93, %v157
    %v159 = vand.u32 %v158, 4294901760
    %v160 = vsub.f32 %v158, %v159
    %v161 = vand.u32 %v160, 4294901760
    %162 = vmatmul.f32.gmra.mxu0 %v161
    %v163 = vpop.f32.mrf.mxu0
    %v164 = vadd.f32 0.0, %v163
    %v165 = vand.u32 %v94, 4294901760
    %v166 = vsub.f32 %v94, %v165
    %v167 = vand.u32 %v166, 4294901760
    %v168 = vsub.f32 %v166, %v167
    %v169 = vand.u32 %v168, 4294901760
    %170 = vmatmul.f32.gmra.mxu0 %v169
    %v171 = vpop.f32.mrf.mxu0
    %v172 = vadd.f32 0.0, %v171
    %v173 = vand.u32 %v95, 4294901760
    %v174 = vsub.f32 %v95, %v173
    %v175 = vand.u32 %v174, 4294901760
    %v176 = vsub.f32 %v174, %v175
    %v177 = vand.u32 %v176, 4294901760
    %178 = vmatmul.f32.gmra.mxu0 %v177
    %v179 = vpop.f32.mrf.mxu0
    %v180 = vadd.f32 0.0, %v179
    %181 = vdwg.mxu0
    %182 = vmatpush.xpose.msra.mxu0 0.0
    %183 = vmatpush.xpose.msra.mxu0 0.0
    %184 = vmatpush.xpose.msra.mxu0 0.0
    %185 = vmatpush.xpose.msra.mxu0 0.0
    %186 = vmatpush.xpose.msra.mxu0 0.0
    %187 = vmatpush.xpose.msra.mxu0 0.0
    %188 = vmatpush.xpose.msra.mxu0 0.0
    %189 = vmatpush.xpose.msra.mxu0 0.0
    %190 = vmatpush.xpose.msra.mxu0 0.0
    %191 = vmatpush.xpose.msra.mxu0 0.0
    %192 = vmatpush.xpose.msra.mxu0 0.0
    %193 = vmatpush.xpose.msra.mxu0 0.0
    %194 = vmatpush.xpose.msra.mxu0 0.0
    %195 = vmatpush.xpose.msra.mxu0 0.0
    %v196 = vand.u32 %v98, 4294901760
    %v197 = vsub.f32 %v98, %v196
    %v198 = vand.u32 %v197, 4294901760
    %v199 = vsub.f32 %v197, %v198
    %v200 = vand.u32 %v199, 4294901760
    %201 = vmatpush.xpose.msra.mxu0 %v200
    %v202 = vand.u32 %v97, 4294901760
    %v203 = vsub.f32 %v97, %v202
    %v204 = vand.u32 %v203, 4294901760
    %v205 = vsub.f32 %v203, %v204
    %v206 = vand.u32 %v205, 4294901760
    %207 = vmatpush.xpose.msra.mxu0 %v206
    %v208 = vand.u32 %v88, 4294901760
    %209 = vmatmul.f32.gmra.mxu0 %v208
    %v210 = vpop.f32.mrf.mxu0
    %v211 = vadd.f32 %v124, %v210
    %v212 = vand.u32 %v89, 4294901760
    %213 = vmatmul.f32.gmra.mxu0 %v212
    %v214 = vpop.f32.mrf.mxu0
    %v215 = vadd.f32 %v132, %v214
    %v216 = vand.u32 %v90, 4294901760
    %217 = vmatmul.f32.gmra.mxu0 %v216
    %v218 = vpop.f32.mrf.mxu0
    %v219 = vadd.f32 %v140, %v218
    %v220 = vand.u32 %v91, 4294901760
    %221 = vmatmul.f32.gmra.mxu0 %v220
    %v222 = vpop.f32.mrf.mxu0
    %v223 = vadd.f32 %v148, %v222
    %v224 = vand.u32 %v92, 4294901760
    %225 = vmatmul.f32.gmra.mxu0 %v224
    %v226 = vpop.f32.mrf.mxu0
    %v227 = vadd.f32 %v156, %v226
    %v228 = vand.u32 %v93, 4294901760
    %229 = vmatmul.f32.gmra.mxu0 %v228
    %v230 = vpop.f32.mrf.mxu0
    %v231 = vadd.f32 %v164, %v230
    %v232 = vand.u32 %v94, 4294901760
    %233 = vmatmul.f32.gmra.mxu0 %v232
    %v234 = vpop.f32.mrf.mxu0
    %v235 = vadd.f32 %v172, %v234
    %v236 = vand.u32 %v95, 4294901760
    %237 = vmatmul.f32.gmra.mxu0 %v236
    %v238 = vpop.f32.mrf.mxu0
    %v239 = vadd.f32 %v180, %v238
    %240 = vdwg.mxu0
    %241 = vmatpush.xpose.msra.mxu0 0.0
    %242 = vmatpush.xpose.msra.mxu0 0.0
    %243 = vmatpush.xpose.msra.mxu0 0.0
    %244 = vmatpush.xpose.msra.mxu0 0.0
    %245 = vmatpush.xpose.msra.mxu0 0.0
    %246 = vmatpush.xpose.msra.mxu0 0.0
    %247 = vmatpush.xpose.msra.mxu0 0.0
    %248 = vmatpush.xpose.msra.mxu0 0.0
    %249 = vmatpush.xpose.msra.mxu0 0.0
    %250 = vmatpush.xpose.msra.mxu0 0.0
    %251 = vmatpush.xpose.msra.mxu0 0.0
    %252 = vmatpush.xpose.msra.mxu0 0.0
    %253 = vmatpush.xpose.msra.mxu0 0.0
    %254 = vmatpush.xpose.msra.mxu0 0.0
    %v255 = vand.u32 %v98, 4294901760
    %v256 = vsub.f32 %v98, %v255
    %257 = vmatpush.xpose.msra.mxu0 %v256
    %v258 = vand.u32 %v97, 4294901760
    %v259 = vsub.f32 %v97, %v258
    %260 = vmatpush.xpose.msra.mxu0 %v259
    %v261 = vand.u32 %v88, 4294901760
    %v262 = vsub.f32 %v88, %v261
    %263 = vmatmul.f32.gmra.mxu0 %v262
    %v264 = vpop.f32.mrf.mxu0
    %v265 = vadd.f32 %v211, %v264
    %v266 = vand.u32 %v89, 4294901760
    %v267 = vsub.f32 %v89, %v266
    %268 = vmatmul.f32.gmra.mxu0 %v267
    %v269 = vpop.f32.mrf.mxu0
    %v270 = vadd.f32 %v215, %v269
    %v271 = vand.u32 %v90, 4294901760
    %v272 = vsub.f32 %v90, %v271
    %273 = vmatmul.f32.gmra.mxu0 %v272
    %v274 = vpop.f32.mrf.mxu0
    %v275 = vadd.f32 %v219, %v274
    %v276 = vand.u32 %v91, 4294901760
    %v277 = vsub.f32 %v91, %v276
    %278 = vmatmul.f32.gmra.mxu0 %v277
    %v279 = vpop.f32.mrf.mxu0
    %v280 = vadd.f32 %v223, %v279
    %v281 = vand.u32 %v92, 4294901760
    %v282 = vsub.f32 %v92, %v281
    %283 = vmatmul.f32.gmra.mxu0 %v282
    %v284 = vpop.f32.mrf.mxu0
    %v285 = vadd.f32 %v227, %v284
    %v286 = vand.u32 %v93, 4294901760
    %v287 = vsub.f32 %v93, %v286
    %288 = vmatmul.f32.gmra.mxu0 %v287
    %v289 = vpop.f32.mrf.mxu0
    %v290 = vadd.f32 %v231, %v289
    %v291 = vand.u32 %v94, 4294901760
    %v292 = vsub.f32 %v94, %v291
    %293 = vmatmul.f32.gmra.mxu0 %v292
    %v294 = vpop.f32.mrf.mxu0
    %v295 = vadd.f32 %v235, %v294
    %v296 = vand.u32 %v95, 4294901760
    %v297 = vsub.f32 %v95, %v296
    %298 = vmatmul.f32.gmra.mxu0 %v297
    %v299 = vpop.f32.mrf.mxu0
    %v300 = vadd.f32 %v239, %v299
    %301 = vdwg.mxu0
    %302 = vmatpush.xpose.msra.mxu0 0.0
    %303 = vmatpush.xpose.msra.mxu0 0.0
    %304 = vmatpush.xpose.msra.mxu0 0.0
    %305 = vmatpush.xpose.msra.mxu0 0.0
    %306 = vmatpush.xpose.msra.mxu0 0.0
    %307 = vmatpush.xpose.msra.mxu0 0.0
    %308 = vmatpush.xpose.msra.mxu0 0.0
    %309 = vmatpush.xpose.msra.mxu0 0.0
    %310 = vmatpush.xpose.msra.mxu0 0.0
    %311 = vmatpush.xpose.msra.mxu0 0.0
    %312 = vmatpush.xpose.msra.mxu0 0.0
    %313 = vmatpush.xpose.msra.mxu0 0.0
    %314 = vmatpush.xpose.msra.mxu0 0.0
    %315 = vmatpush.xpose.msra.mxu0 0.0
    %v316 = vand.u32 %v98, 4294901760
    %317 = vmatpush.xpose.msra.mxu0 %v316
    %v318 = vand.u32 %v97, 4294901760
    %319 = vmatpush.xpose.msra.mxu0 %v318
    %v320 = vand.u32 %v88, 4294901760
    %v321 = vsub.f32 %v88, %v320
    %v322 = vand.u32 %v321, 4294901760
    %323 = vmatmul.f32.gmra.mxu0 %v322
    %v324 = vpop.f32.mrf.mxu0
    %v325 = vadd.f32 %v265, %v324
    %v326 = vand.u32 %v89, 4294901760
    %v327 = vsub.f32 %v89, %v326
    %v328 = vand.u32 %v327, 4294901760
    %329 = vmatmul.f32.gmra.mxu0 %v328
    %v330 = vpop.f32.mrf.mxu0
    %v331 = vadd.f32 %v270, %v330
    %v332 = vand.u32 %v90, 4294901760
    %v333 = vsub.f32 %v90, %v332
    %v334 = vand.u32 %v333, 4294901760
    %335 = vmatmul.f32.gmra.mxu0 %v334
    %v336 = vpop.f32.mrf.mxu0
    %v337 = vadd.f32 %v275, %v336
    %v338 = vand.u32 %v91, 4294901760
    %v339 = vsub.f32 %v91, %v338
    %v340 = vand.u32 %v339, 4294901760
    %341 = vmatmul.f32.gmra.mxu0 %v340
    %v342 = vpop.f32.mrf.mxu0
    %v343 = vadd.f32 %v280, %v342
    %v344 = vand.u32 %v92, 4294901760
    %v345 = vsub.f32 %v92, %v344
    %v346 = vand.u32 %v345, 4294901760
    %347 = vmatmul.f32.gmra.mxu0 %v346
    %v348 = vpop.f32.mrf.mxu0
    %v349 = vadd.f32 %v285, %v348
    %v350 = vand.u32 %v93, 4294901760
    %v351 = vsub.f32 %v93, %v350
    %v352 = vand.u32 %v351, 4294901760
    %353 = vmatmul.f32.gmra.mxu0 %v352
    %v354 = vpop.f32.mrf.mxu0
    %v355 = vadd.f32 %v290, %v354
    %v356 = vand.u32 %v94, 4294901760
    %v357 = vsub.f32 %v94, %v356
    %v358 = vand.u32 %v357, 4294901760
    %359 = vmatmul.f32.gmra.mxu0 %v358
    %v360 = vpop.f32.mrf.mxu0
    %v361 = vadd.f32 %v295, %v360
    %v362 = vand.u32 %v95, 4294901760
    %v363 = vsub.f32 %v95, %v362
    %v364 = vand.u32 %v363, 4294901760
    %365 = vmatmul.f32.gmra.mxu0 %v364
    %v366 = vpop.f32.mrf.mxu0
    %v367 = vadd.f32 %v300, %v366
    %368 = vdwg.mxu0
    %369 = vmatpush.xpose.msra.mxu0 0.0
    %370 = vmatpush.xpose.msra.mxu0 0.0
    %371 = vmatpush.xpose.msra.mxu0 0.0
    %372 = vmatpush.xpose.msra.mxu0 0.0
    %373 = vmatpush.xpose.msra.mxu0 0.0
    %374 = vmatpush.xpose.msra.mxu0 0.0
    %375 = vmatpush.xpose.msra.mxu0 0.0
    %376 = vmatpush.xpose.msra.mxu0 0.0
    %377 = vmatpush.xpose.msra.mxu0 0.0
    %378 = vmatpush.xpose.msra.mxu0 0.0
    %379 = vmatpush.xpose.msra.mxu0 0.0
    %380 = vmatpush.xpose.msra.mxu0 0.0
    %381 = vmatpush.xpose.msra.mxu0 0.0
    %382 = vmatpush.xpose.msra.mxu0 0.0
    %v383 = vand.u32 %v98, 4294901760
    %v384 = vsub.f32 %v98, %v383
    %v385 = vand.u32 %v384, 4294901760
    %386 = vmatpush.xpose.msra.mxu0 %v385
    %v387 = vand.u32 %v97, 4294901760
    %v388 = vsub.f32 %v97, %v387
    %v389 = vand.u32 %v388, 4294901760
    %390 = vmatpush.xpose.msra.mxu0 %v389
    %v391 = vand.u32 %v88, 4294901760
    %392 = vmatmul.f32.gmra.mxu0 %v391
    %v393 = vpop.f32.mrf.mxu0
    %v394 = vadd.f32 %v325, %v393
    %v395 = vand.u32 %v89, 4294901760
    %396 = vmatmul.f32.gmra.mxu0 %v395
    %v397 = vpop.f32.mrf.mxu0
    %v398 = vadd.f32 %v331, %v397
    %v399 = vand.u32 %v90, 4294901760
    %400 = vmatmul.f32.gmra.mxu0 %v399
    %v401 = vpop.f32.mrf.mxu0
    %v402 = vadd.f32 %v337, %v401
    %v403 = vand.u32 %v91, 4294901760
    %404 = vmatmul.f32.gmra.mxu0 %v403
    %v405 = vpop.f32.mrf.mxu0
    %v406 = vadd.f32 %v343, %v405
    %v407 = vand.u32 %v92, 4294901760
    %408 = vmatmul.f32.gmra.mxu0 %v407
    %v409 = vpop.f32.mrf.mxu0
    %v410 = vadd.f32 %v349, %v409
    %v411 = vand.u32 %v93, 4294901760
    %412 = vmatmul.f32.gmra.mxu0 %v411
    %v413 = vpop.f32.mrf.mxu0
    %v414 = vadd.f32 %v355, %v413
    %v415 = vand.u32 %v94, 4294901760
    %416 = vmatmul.f32.gmra.mxu0 %v415
    %v417 = vpop.f32.mrf.mxu0
    %v418 = vadd.f32 %v361, %v417
    %v419 = vand.u32 %v95, 4294901760
    %420 = vmatmul.f32.gmra.mxu0 %v419
    %v421 = vpop.f32.mrf.mxu0
    %v422 = vadd.f32 %v367, %v421
    %423 = vdwg.mxu0
    %424 = vmatpush.xpose.msra.mxu0 0.0
    %425 = vmatpush.xpose.msra.mxu0 0.0
    %426 = vmatpush.xpose.msra.mxu0 0.0
    %427 = vmatpush.xpose.msra.mxu0 0.0
    %428 = vmatpush.xpose.msra.mxu0 0.0
    %429 = vmatpush.xpose.msra.mxu0 0.0
    %430 = vmatpush.xpose.msra.mxu0 0.0
    %431 = vmatpush.xpose.msra.mxu0 0.0
    %432 = vmatpush.xpose.msra.mxu0 0.0
    %433 = vmatpush.xpose.msra.mxu0 0.0
    %434 = vmatpush.xpose.msra.mxu0 0.0
    %435 = vmatpush.xpose.msra.mxu0 0.0
    %436 = vmatpush.xpose.msra.mxu0 0.0
    %437 = vmatpush.xpose.msra.mxu0 0.0
    %v438 = vand.u32 %v98, 4294901760
    %439 = vmatpush.xpose.msra.mxu0 %v438
    %v440 = vand.u32 %v97, 4294901760
    %441 = vmatpush.xpose.msra.mxu0 %v440
    %v442 = vand.u32 %v88, 4294901760
    %443 = vmatmul.f32.gmra.mxu0 %v442
    %v444 = vpop.f32.mrf.mxu0
    %v445 = vadd.f32 %v394, %v444
    %v446 = vand.u32 %v89, 4294901760
    %447 = vmatmul.f32.gmra.mxu0 %v446
    %v448 = vpop.f32.mrf.mxu0
    %v449 = vadd.f32 %v398, %v448
    %v450 = vand.u32 %v90, 4294901760
    %451 = vmatmul.f32.gmra.mxu0 %v450
    %v452 = vpop.f32.mrf.mxu0
    %v453 = vadd.f32 %v402, %v452
    %v454 = vand.u32 %v91, 4294901760
    %455 = vmatmul.f32.gmra.mxu0 %v454
    %v456 = vpop.f32.mrf.mxu0
    %v457 = vadd.f32 %v406, %v456
    %v458 = vand.u32 %v92, 4294901760
    %459 = vmatmul.f32.gmra.mxu0 %v458
    %v460 = vpop.f32.mrf.mxu0
    %v461 = vadd.f32 %v410, %v460
    %v462 = vand.u32 %v93, 4294901760
    %463 = vmatmul.f32.gmra.mxu0 %v462
    %v464 = vpop.f32.mrf.mxu0
    %v465 = vadd.f32 %v414, %v464
    %v466 = vand.u32 %v94, 4294901760
    %467 = vmatmul.f32.gmra.mxu0 %v466
    %v468 = vpop.f32.mrf.mxu0
    %v469 = vadd.f32 %v418, %v468
    %v470 = vand.u32 %v95, 4294901760
    %471 = vmatmul.f32.gmra.mxu0 %v470
    %v472 = vpop.f32.mrf.mxu0
    %v473 = vadd.f32 %v422, %v472
    %474 = vdwg.mxu0
    %v475 = vmul.f32 %v445, 2.0
    %v476 = vmul.f32 %v449, 2.0
    %v477 = vmul.f32 %v453, 2.0
    %v478 = vmul.f32 %v457, 2.0
    %v479 = vmul.f32 %v461, 2.0
    %v480 = vmul.f32 %v465, 2.0
    %v481 = vmul.f32 %v469, 2.0
    %v482 = vmul.f32 %v473, 2.0
    %v484 = vperm.slane %v96, 0
    %v486 = vsub.f32 %v484, %v475
    %v487 = vsub.f32 %v484, %v476
    %v488 = vsub.f32 %v484, %v477
    %v489 = vsub.f32 %v484, %v478
    %v490 = vsub.f32 %v484, %v479
    %v491 = vsub.f32 %v484, %v480
    %v492 = vsub.f32 %v484, %v481
    %v493 = vsub.f32 %v484, %v482
    %v494 = vlaneseq
    %v495 = vand.u32 %v494, 127
    %vm496 = vcmp.lt.s32.totalorder %v495, 7
    %v497 = vsel %vm496, %v486, inf
    %v498 = vsel %vm496, %v487, inf
    %v499 = vsel %vm496, %v488, inf
    %v500 = vsel %vm496, %v489, inf
    %v501 = vsel %vm496, %v490, inf
    %v502 = vsel %vm496, %v491, inf
    %v503 = vsel %vm496, %v492, inf
    %v504 = vsel %vm496, %v493, inf
    %vm505 = vcmask 113664
    %v506 = vsel %vm505, %v497, inf
    %507 = vmin.xlane.f32.xlu0 %v506
    %v508 = vpop.xlane.xlu0 %507
    %v509 = vsel %vm505, %v498, inf
    %510 = vmin.xlane.f32.xlu0 %v509
    %v511 = vpop.xlane.xlu0 %510
    %v512 = vsel %vm505, %v499, inf
    %513 = vmin.xlane.f32.xlu0 %v512
    %v514 = vpop.xlane.xlu0 %513
    %v515 = vsel %vm505, %v500, inf
    %516 = vmin.xlane.f32.xlu0 %v515
    %v517 = vpop.xlane.xlu0 %516
    %v518 = vsel %vm505, %v501, inf
    %519 = vmin.xlane.f32.xlu0 %v518
    %v520 = vpop.xlane.xlu0 %519
    %v521 = vsel %vm505, %v502, inf
    %522 = vmin.xlane.f32.xlu0 %v521
    %v523 = vpop.xlane.xlu0 %522
    %v524 = vsel %vm505, %v503, inf
    %525 = vmin.xlane.f32.xlu0 %v524
    %v526 = vpop.xlane.xlu0 %525
    %v527 = vsel %vm505, %v504, inf
    %528 = vmin.xlane.f32.xlu0 %v527
    %v529 = vpop.xlane.xlu0 %528
    %vm530 = vcmp.eq.f32.partialorder %v497, %v508
    %vm531 = vcmp.eq.f32.partialorder %v498, %v511
    %vm532 = vcmp.eq.f32.partialorder %v499, %v514
    %vm533 = vcmp.eq.f32.partialorder %v500, %v517
    %vm534 = vcmp.eq.f32.partialorder %v501, %v520
    %vm535 = vcmp.eq.f32.partialorder %v502, %v523
    %vm536 = vcmp.eq.f32.partialorder %v503, %v526
    %vm537 = vcmp.eq.f32.partialorder %v504, %v529
    %v538 = vsel %vm530, %v495, 14
    %v539 = vsel %vm531, %v495, 14
    %v540 = vsel %vm532, %v495, 14
    %v541 = vsel %vm533, %v495, 14
    %v542 = vsel %vm534, %v495, 14
    %v543 = vsel %vm535, %v495, 14
    %v544 = vsel %vm536, %v495, 14
    %v545 = vsel %vm537, %v495, 14
    %v546 = vsel %vm505, %v538, 2147483647
    %v547 = vand.u32 %v546, 65535
    %v548 = vshra.s32 %v546, 16
    %v549 = vcvt.s32.f32 %v547
    %v550 = vcvt.s32.f32 %v548
    %551 = vmin.xlane.f32.xlu0 %v550
    %v552 = vpop.xlane.xlu0 %551
    %vm553 = vcmp.eq.f32.partialorder %v550, %v552
    %v554 = vsel %vm553, %v549, inf
    %555 = vmin.xlane.f32.xlu0 %v554
    %v556 = vpop.xlane.xlu0 %555
    %v557 = vcvt.f32.s32 %v556
    %v558 = vcvt.f32.s32 %v552
    %v559 = vshll.u32 %v558, 16
    %v560 = vadd.s32 %v559, %v557
    %v561 = vsel %vm505, %v539, 2147483647
    %v562 = vand.u32 %v561, 65535
    %v563 = vshra.s32 %v561, 16
    %v564 = vcvt.s32.f32 %v562
    %v565 = vcvt.s32.f32 %v563
    %566 = vmin.xlane.f32.xlu0 %v565
    %v567 = vpop.xlane.xlu0 %566
    %vm568 = vcmp.eq.f32.partialorder %v565, %v567
    %v569 = vsel %vm568, %v564, inf
    %570 = vmin.xlane.f32.xlu0 %v569
    %v571 = vpop.xlane.xlu0 %570
    %v572 = vcvt.f32.s32 %v571
    %v573 = vcvt.f32.s32 %v567
    %v574 = vshll.u32 %v573, 16
    %v575 = vadd.s32 %v574, %v572
    %v576 = vsel %vm505, %v540, 2147483647
    %v577 = vand.u32 %v576, 65535
    %v578 = vshra.s32 %v576, 16
    %v579 = vcvt.s32.f32 %v577
    %v580 = vcvt.s32.f32 %v578
    %581 = vmin.xlane.f32.xlu0 %v580
    %v582 = vpop.xlane.xlu0 %581
    %vm583 = vcmp.eq.f32.partialorder %v580, %v582
    %v584 = vsel %vm583, %v579, inf
    %585 = vmin.xlane.f32.xlu0 %v584
    %v586 = vpop.xlane.xlu0 %585
    %v587 = vcvt.f32.s32 %v586
    %v588 = vcvt.f32.s32 %v582
    %v589 = vshll.u32 %v588, 16
    %v590 = vadd.s32 %v589, %v587
    %v591 = vsel %vm505, %v541, 2147483647
    %v592 = vand.u32 %v591, 65535
    %v593 = vshra.s32 %v591, 16
    %v594 = vcvt.s32.f32 %v592
    %v595 = vcvt.s32.f32 %v593
    %596 = vmin.xlane.f32.xlu0 %v595
    %v597 = vpop.xlane.xlu0 %596
    %vm598 = vcmp.eq.f32.partialorder %v595, %v597
    %v599 = vsel %vm598, %v594, inf
    %600 = vmin.xlane.f32.xlu0 %v599
    %v601 = vpop.xlane.xlu0 %600
    %v602 = vcvt.f32.s32 %v601
    %v603 = vcvt.f32.s32 %v597
    %v604 = vshll.u32 %v603, 16
    %v605 = vadd.s32 %v604, %v602
    %v606 = vsel %vm505, %v542, 2147483647
    %v607 = vand.u32 %v606, 65535
    %v608 = vshra.s32 %v606, 16
    %v609 = vcvt.s32.f32 %v607
    %v610 = vcvt.s32.f32 %v608
    %611 = vmin.xlane.f32.xlu0 %v610
    %v612 = vpop.xlane.xlu0 %611
    %vm613 = vcmp.eq.f32.partialorder %v610, %v612
    %v614 = vsel %vm613, %v609, inf
    %615 = vmin.xlane.f32.xlu0 %v614
    %v616 = vpop.xlane.xlu0 %615
    %v617 = vcvt.f32.s32 %v616
    %v618 = vcvt.f32.s32 %v612
    %v619 = vshll.u32 %v618, 16
    %v620 = vadd.s32 %v619, %v617
    %v621 = vsel %vm505, %v543, 2147483647
    %v622 = vand.u32 %v621, 65535
    %v623 = vshra.s32 %v621, 16
    %v624 = vcvt.s32.f32 %v622
    %v625 = vcvt.s32.f32 %v623
    %626 = vmin.xlane.f32.xlu0 %v625
    %v627 = vpop.xlane.xlu0 %626
    %vm628 = vcmp.eq.f32.partialorder %v625, %v627
    %v629 = vsel %vm628, %v624, inf
    %630 = vmin.xlane.f32.xlu0 %v629
    %v631 = vpop.xlane.xlu0 %630
    %v632 = vcvt.f32.s32 %v631
    %v633 = vcvt.f32.s32 %v627
    %v634 = vshll.u32 %v633, 16
    %v635 = vadd.s32 %v634, %v632
    %v636 = vsel %vm505, %v544, 2147483647
    %v637 = vand.u32 %v636, 65535
    %v638 = vshra.s32 %v636, 16
    %v639 = vcvt.s32.f32 %v637
    %v640 = vcvt.s32.f32 %v638
    %641 = vmin.xlane.f32.xlu0 %v640
    %v642 = vpop.xlane.xlu0 %641
    %vm643 = vcmp.eq.f32.partialorder %v640, %v642
    %v644 = vsel %vm643, %v639, inf
    %645 = vmin.xlane.f32.xlu0 %v644
    %v646 = vpop.xlane.xlu0 %645
    %v647 = vcvt.f32.s32 %v646
    %v648 = vcvt.f32.s32 %v642
    %v649 = vshll.u32 %v648, 16
    %v650 = vadd.s32 %v649, %v647
    %v651 = vsel %vm505, %v545, 2147483647
    %v652 = vand.u32 %v651, 65535
    %v653 = vshra.s32 %v651, 16
    %v654 = vcvt.s32.f32 %v652
    %v655 = vcvt.s32.f32 %v653
    %656 = vmin.xlane.f32.xlu0 %v655
    %v657 = vpop.xlane.xlu0 %656
    %vm658 = vcmp.eq.f32.partialorder %v655, %v657
    %v659 = vsel %vm658, %v654, inf
    %660 = vmin.xlane.f32.xlu0 %v659
    %v661 = vpop.xlane.xlu0 %660
    %v662 = vcvt.f32.s32 %v661
    %v663 = vcvt.f32.s32 %v657
    %v664 = vshll.u32 %v663, 16
    %v665 = vadd.s32 %v664, %v662
    %vm666 = vcmp.eq.s32.totalorder %v495, %v560
    %vm667 = vcmp.eq.s32.totalorder %v495, %v575
    %vm668 = vcmp.eq.s32.totalorder %v495, %v590
    %vm669 = vcmp.eq.s32.totalorder %v495, %v605
    %vm670 = vcmp.eq.s32.totalorder %v495, %v620
    %vm671 = vcmp.eq.s32.totalorder %v495, %v635
    %vm672 = vcmp.eq.s32.totalorder %v495, %v650
    %vm673 = vcmp.eq.s32.totalorder %v495, %v665
    %v674 = vsel %vm666, 1, 0
    %v675 = vsel %vm667, 1, 0
    %v676 = vsel %vm668, 1, 0
    %v677 = vsel %vm669, 1, 0
    %v678 = vsel %vm670, 1, 0
    %v679 = vsel %vm671, 1, 0
    %v680 = vsel %vm672, 1, 0
    %v681 = vsel %vm673, 1, 0
    %v682 = vcvt.s32.f32 %v674
    %v683 = vcvt.s32.f32 %v675
    %v684 = vcvt.s32.f32 %v676
    %v685 = vcvt.s32.f32 %v677
    %v686 = vcvt.s32.f32 %v678
    %v687 = vcvt.s32.f32 %v679
    %v688 = vcvt.s32.f32 %v680
    %v689 = vcvt.s32.f32 %v681
    %v690 = vld [vmem:[#allocation8] sm:$0xff]
    %v691 = vld [vmem:[#allocation8 + $0x8] sm:$0x3f]
    %v693 = vsel %vm505, %v682, 0
    %v696 = vsel %vm505, %v683, 0
    %v699 = vsel %vm505, %v684, 0
    %v702 = vsel %vm505, %v685, 0
    %v705 = vsel %vm505, %v686, 0
    %v708 = vsel %vm505, %v687, 0
    %v711 = vsel %vm505, %v688, 0
    %v714 = vsel %vm505, %v689, 0
    %vm716 = vcmask 1045504
    %v718 = vsel %vm716, %v691, 0
    %720 = vmatpush.msra.mxu0 0.0
    %721 = vmatpush.msra.mxu0 0.0
    %722 = vmatpush.msra.mxu0 0.0
    %723 = vmatpush.msra.mxu0 0.0
    %724 = vmatpush.msra.mxu0 0.0
    %725 = vmatpush.msra.mxu0 0.0
    %726 = vmatpush.msra.mxu0 0.0
    %727 = vmatpush.msra.mxu0 0.0
    %728 = vmatpush.msra.mxu0 0.0
    %729 = vmatpush.msra.mxu0 0.0
    %730 = vmatpush.msra.mxu0 0.0
    %731 = vmatpush.msra.mxu0 0.0
    %732 = vmatpush.msra.mxu0 0.0
    %733 = vmatpush.msra.mxu0 0.0
    %v734 = vand.u32 %v718, 4294901760
    %735 = vmatpush.msra.mxu0 %v734
    %v736 = vand.u32 %v690, 4294901760
    %737 = vmatpush.msra.mxu0 %v736
    %v738 = vand.u32 %v693, 4294901760
    %v739 = vsub.f32 %v693, %v738
    %v740 = vand.u32 %v739, 4294901760
    %v741 = vsub.f32 %v739, %v740
    %v742 = vand.u32 %v741, 4294901760
    %743 = vmatmul.f32.gmra.mxu0 %v742
    %v744 = vpop.f32.mrf.mxu0
    %v745 = vadd.f32 0.0, %v744
    %v746 = vand.u32 %v696, 4294901760
    %v747 = vsub.f32 %v696, %v746
    %v748 = vand.u32 %v747, 4294901760
    %v749 = vsub.f32 %v747, %v748
    %v750 = vand.u32 %v749, 4294901760
    %751 = vmatmul.f32.gmra.mxu0 %v750
    %v752 = vpop.f32.mrf.mxu0
    %v753 = vadd.f32 0.0, %v752
    %v754 = vand.u32 %v699, 4294901760
    %v755 = vsub.f32 %v699, %v754
    %v756 = vand.u32 %v755, 4294901760
    %v757 = vsub.f32 %v755, %v756
    %v758 = vand.u32 %v757, 4294901760
    %759 = vmatmul.f32.gmra.mxu0 %v758
    %v760 = vpop.f32.mrf.mxu0
    %v761 = vadd.f32 0.0, %v760
    %v762 = vand.u32 %v702, 4294901760
    %v763 = vsub.f32 %v702, %v762
    %v764 = vand.u32 %v763, 4294901760
    %v765 = vsub.f32 %v763, %v764
    %v766 = vand.u32 %v765, 4294901760
    %767 = vmatmul.f32.gmra.mxu0 %v766
    %v768 = vpop.f32.mrf.mxu0
    %v769 = vadd.f32 0.0, %v768
    %v770 = vand.u32 %v705, 4294901760
    %v771 = vsub.f32 %v705, %v770
    %v772 = vand.u32 %v771, 4294901760
    %v773 = vsub.f32 %v771, %v772
    %v774 = vand.u32 %v773, 4294901760
    %775 = vmatmul.f32.gmra.mxu0 %v774
    %v776 = vpop.f32.mrf.mxu0
    %v777 = vadd.f32 0.0, %v776
    %v778 = vand.u32 %v708, 4294901760
    %v779 = vsub.f32 %v708, %v778
    %v780 = vand.u32 %v779, 4294901760
    %v781 = vsub.f32 %v779, %v780
    %v782 = vand.u32 %v781, 4294901760
    %783 = vmatmul.f32.gmra.mxu0 %v782
    %v784 = vpop.f32.mrf.mxu0
    %v785 = vadd.f32 0.0, %v784
    %v786 = vand.u32 %v711, 4294901760
    %v787 = vsub.f32 %v711, %v786
    %v788 = vand.u32 %v787, 4294901760
    %v789 = vsub.f32 %v787, %v788
    %v790 = vand.u32 %v789, 4294901760
    %791 = vmatmul.f32.gmra.mxu0 %v790
    %v792 = vpop.f32.mrf.mxu0
    %v793 = vadd.f32 0.0, %v792
    %v794 = vand.u32 %v714, 4294901760
    %v795 = vsub.f32 %v714, %v794
    %v796 = vand.u32 %v795, 4294901760
    %v797 = vsub.f32 %v795, %v796
    %v798 = vand.u32 %v797, 4294901760
    %799 = vmatmul.f32.gmra.mxu0 %v798
    %v800 = vpop.f32.mrf.mxu0
    %v801 = vadd.f32 0.0, %v800
    %802 = vdwg.mxu0
    %803 = vmatpush.msra.mxu0 0.0
    %804 = vmatpush.msra.mxu0 0.0
    %805 = vmatpush.msra.mxu0 0.0
    %806 = vmatpush.msra.mxu0 0.0
    %807 = vmatpush.msra.mxu0 0.0
    %808 = vmatpush.msra.mxu0 0.0
    %809 = vmatpush.msra.mxu0 0.0
    %810 = vmatpush.msra.mxu0 0.0
    %811 = vmatpush.msra.mxu0 0.0
    %812 = vmatpush.msra.mxu0 0.0
    %813 = vmatpush.msra.mxu0 0.0
    %814 = vmatpush.msra.mxu0 0.0
    %815 = vmatpush.msra.mxu0 0.0
    %816 = vmatpush.msra.mxu0 0.0
    %v817 = vand.u32 %v718, 4294901760
    %v818 = vsub.f32 %v718, %v817
    %v819 = vand.u32 %v818, 4294901760
    %v820 = vsub.f32 %v818, %v819
    %v821 = vand.u32 %v820, 4294901760
    %822 = vmatpush.msra.mxu0 %v821
    %v823 = vand.u32 %v690, 4294901760
    %v824 = vsub.f32 %v690, %v823
    %v825 = vand.u32 %v824, 4294901760
    %v826 = vsub.f32 %v824, %v825
    %v827 = vand.u32 %v826, 4294901760
    %828 = vmatpush.msra.mxu0 %v827
    %v829 = vand.u32 %v693, 4294901760
    %830 = vmatmul.f32.gmra.mxu0 %v829
    %v831 = vpop.f32.mrf.mxu0
    %v832 = vadd.f32 %v745, %v831
    %v833 = vand.u32 %v696, 4294901760
    %834 = vmatmul.f32.gmra.mxu0 %v833
    %v835 = vpop.f32.mrf.mxu0
    %v836 = vadd.f32 %v753, %v835
    %v837 = vand.u32 %v699, 4294901760
    %838 = vmatmul.f32.gmra.mxu0 %v837
    %v839 = vpop.f32.mrf.mxu0
    %v840 = vadd.f32 %v761, %v839
    %v841 = vand.u32 %v702, 4294901760
    %842 = vmatmul.f32.gmra.mxu0 %v841
    %v843 = vpop.f32.mrf.mxu0
    %v844 = vadd.f32 %v769, %v843
    %v845 = vand.u32 %v705, 4294901760
    %846 = vmatmul.f32.gmra.mxu0 %v845
    %v847 = vpop.f32.mrf.mxu0
    %v848 = vadd.f32 %v777, %v847
    %v849 = vand.u32 %v708, 4294901760
    %850 = vmatmul.f32.gmra.mxu0 %v849
    %v851 = vpop.f32.mrf.mxu0
    %v852 = vadd.f32 %v785, %v851
    %v853 = vand.u32 %v711, 4294901760
    %854 = vmatmul.f32.gmra.mxu0 %v853
    %v855 = vpop.f32.mrf.mxu0
    %v856 = vadd.f32 %v793, %v855
    %v857 = vand.u32 %v714, 4294901760
    %858 = vmatmul.f32.gmra.mxu0 %v857
    %v859 = vpop.f32.mrf.mxu0
    %v860 = vadd.f32 %v801, %v859
    %861 = vdwg.mxu0
    %862 = vmatpush.msra.mxu0 0.0
    %863 = vmatpush.msra.mxu0 0.0
    %864 = vmatpush.msra.mxu0 0.0
    %865 = vmatpush.msra.mxu0 0.0
    %866 = vmatpush.msra.mxu0 0.0
    %867 = vmatpush.msra.mxu0 0.0
    %868 = vmatpush.msra.mxu0 0.0
    %869 = vmatpush.msra.mxu0 0.0
    %870 = vmatpush.msra.mxu0 0.0
    %871 = vmatpush.msra.mxu0 0.0
    %872 = vmatpush.msra.mxu0 0.0
    %873 = vmatpush.msra.mxu0 0.0
    %874 = vmatpush.msra.mxu0 0.0
    %875 = vmatpush.msra.mxu0 0.0
    %v876 = vand.u32 %v718, 4294901760
    %v877 = vsub.f32 %v718, %v876
    %878 = vmatpush.msra.mxu0 %v877
    %v879 = vand.u32 %v690, 4294901760
    %v880 = vsub.f32 %v690, %v879
    %881 = vmatpush.msra.mxu0 %v880
    %v882 = vand.u32 %v693, 4294901760
    %v883 = vsub.f32 %v693, %v882
    %884 = vmatmul.f32.gmra.mxu0 %v883
    %v885 = vpop.f32.mrf.mxu0
    %v886 = vadd.f32 %v832, %v885
    %v887 = vand.u32 %v696, 4294901760
    %v888 = vsub.f32 %v696, %v887
    %889 = vmatmul.f32.gmra.mxu0 %v888
    %v890 = vpop.f32.mrf.mxu0
    %v891 = vadd.f32 %v836, %v890
    %v892 = vand.u32 %v699, 4294901760
    %v893 = vsub.f32 %v699, %v892
    %894 = vmatmul.f32.gmra.mxu0 %v893
    %v895 = vpop.f32.mrf.mxu0
    %v896 = vadd.f32 %v840, %v895
    %v897 = vand.u32 %v702, 4294901760
    %v898 = vsub.f32 %v702, %v897
    %899 = vmatmul.f32.gmra.mxu0 %v898
    %v900 = vpop.f32.mrf.mxu0
    %v901 = vadd.f32 %v844, %v900
    %v902 = vand.u32 %v705, 4294901760
    %v903 = vsub.f32 %v705, %v902
    %904 = vmatmul.f32.gmra.mxu0 %v903
    %v905 = vpop.f32.mrf.mxu0
    %v906 = vadd.f32 %v848, %v905
    %v907 = vand.u32 %v708, 4294901760
    %v908 = vsub.f32 %v708, %v907
    %909 = vmatmul.f32.gmra.mxu0 %v908
    %v910 = vpop.f32.mrf.mxu0
    %v911 = vadd.f32 %v852, %v910
    %v912 = vand.u32 %v711, 4294901760
    %v913 = vsub.f32 %v711, %v912
    %914 = vmatmul.f32.gmra.mxu0 %v913
    %v915 = vpop.f32.mrf.mxu0
    %v916 = vadd.f32 %v856, %v915
    %v917 = vand.u32 %v714, 4294901760
    %v918 = vsub.f32 %v714, %v917
    %919 = vmatmul.f32.gmra.mxu0 %v918
    %v920 = vpop.f32.mrf.mxu0
    %v921 = vadd.f32 %v860, %v920
    %922 = vdwg.mxu0
    %923 = vmatpush.msra.mxu0 0.0
    %924 = vmatpush.msra.mxu0 0.0
    %925 = vmatpush.msra.mxu0 0.0
    %926 = vmatpush.msra.mxu0 0.0
    %927 = vmatpush.msra.mxu0 0.0
    %928 = vmatpush.msra.mxu0 0.0
    %929 = vmatpush.msra.mxu0 0.0
    %930 = vmatpush.msra.mxu0 0.0
    %931 = vmatpush.msra.mxu0 0.0
    %932 = vmatpush.msra.mxu0 0.0
    %933 = vmatpush.msra.mxu0 0.0
    %934 = vmatpush.msra.mxu0 0.0
    %935 = vmatpush.msra.mxu0 0.0
    %936 = vmatpush.msra.mxu0 0.0
    %v937 = vand.u32 %v718, 4294901760
    %938 = vmatpush.msra.mxu0 %v937
    %v939 = vand.u32 %v690, 4294901760
    %940 = vmatpush.msra.mxu0 %v939
    %v941 = vand.u32 %v693, 4294901760
    %v942 = vsub.f32 %v693, %v941
    %v943 = vand.u32 %v942, 4294901760
    %944 = vmatmul.f32.gmra.mxu0 %v943
    %v945 = vpop.f32.mrf.mxu0
    %v946 = vadd.f32 %v886, %v945
    %v947 = vand.u32 %v696, 4294901760
    %v948 = vsub.f32 %v696, %v947
    %v949 = vand.u32 %v948, 4294901760
    %950 = vmatmul.f32.gmra.mxu0 %v949
    %v951 = vpop.f32.mrf.mxu0
    %v952 = vadd.f32 %v891, %v951
    %v953 = vand.u32 %v699, 4294901760
    %v954 = vsub.f32 %v699, %v953
    %v955 = vand.u32 %v954, 4294901760
    %956 = vmatmul.f32.gmra.mxu0 %v955
    %v957 = vpop.f32.mrf.mxu0
    %v958 = vadd.f32 %v896, %v957
    %v959 = vand.u32 %v702, 4294901760
    %v960 = vsub.f32 %v702, %v959
    %v961 = vand.u32 %v960, 4294901760
    %962 = vmatmul.f32.gmra.mxu0 %v961
    %v963 = vpop.f32.mrf.mxu0
    %v964 = vadd.f32 %v901, %v963
    %v965 = vand.u32 %v705, 4294901760
    %v966 = vsub.f32 %v705, %v965
    %v967 = vand.u32 %v966, 4294901760
    %968 = vmatmul.f32.gmra.mxu0 %v967
    %v969 = vpop.f32.mrf.mxu0
    %v970 = vadd.f32 %v906, %v969
    %v971 = vand.u32 %v708, 4294901760
    %v972 = vsub.f32 %v708, %v971
    %v973 = vand.u32 %v972, 4294901760
    %974 = vmatmul.f32.gmra.mxu0 %v973
    %v975 = vpop.f32.mrf.mxu0
    %v976 = vadd.f32 %v911, %v975
    %v977 = vand.u32 %v711, 4294901760
    %v978 = vsub.f32 %v711, %v977
    %v979 = vand.u32 %v978, 4294901760
    %980 = vmatmul.f32.gmra.mxu0 %v979
    %v981 = vpop.f32.mrf.mxu0
    %v982 = vadd.f32 %v916, %v981
    %v983 = vand.u32 %v714, 4294901760
    %v984 = vsub.f32 %v714, %v983
    %v985 = vand.u32 %v984, 4294901760
    %986 = vmatmul.f32.gmra.mxu0 %v985
    %v987 = vpop.f32.mrf.mxu0
    %v988 = vadd.f32 %v921, %v987
    %989 = vdwg.mxu0
    %990 = vmatpush.msra.mxu0 0.0
    %991 = vmatpush.msra.mxu0 0.0
    %992 = vmatpush.msra.mxu0 0.0
    %993 = vmatpush.msra.mxu0 0.0
    %994 = vmatpush.msra.mxu0 0.0
    %995 = vmatpush.msra.mxu0 0.0
    %996 = vmatpush.msra.mxu0 0.0
    %997 = vmatpush.msra.mxu0 0.0
    %998 = vmatpush.msra.mxu0 0.0
    %999 = vmatpush.msra.mxu0 0.0
    %1000 = vmatpush.msra.mxu0 0.0
    %1001 = vmatpush.msra.mxu0 0.0
    %1002 = vmatpush.msra.mxu0 0.0
    %1003 = vmatpush.msra.mxu0 0.0
    %v1004 = vand.u32 %v718, 4294901760
    %v1005 = vsub.f32 %v718, %v1004
    %v1006 = vand.u32 %v1005, 4294901760
    %1007 = vmatpush.msra.mxu0 %v1006
    %v1008 = vand.u32 %v690, 4294901760
    %v1009 = vsub.f32 %v690, %v1008
    %v1010 = vand.u32 %v1009, 4294901760
    %1011 = vmatpush.msra.mxu0 %v1010
    %v1012 = vand.u32 %v693, 4294901760
    %1013 = vmatmul.f32.gmra.mxu0 %v1012
    %v1014 = vpop.f32.mrf.mxu0
    %v1015 = vadd.f32 %v946, %v1014
    %v1016 = vand.u32 %v696, 4294901760
    %1017 = vmatmul.f32.gmra.mxu0 %v1016
    %v1018 = vpop.f32.mrf.mxu0
    %v1019 = vadd.f32 %v952, %v1018
    %v1020 = vand.u32 %v699, 4294901760
    %1021 = vmatmul.f32.gmra.mxu0 %v1020
    %v1022 = vpop.f32.mrf.mxu0
    %v1023 = vadd.f32 %v958, %v1022
    %v1024 = vand.u32 %v702, 4294901760
    %1025 = vmatmul.f32.gmra.mxu0 %v1024
    %v1026 = vpop.f32.mrf.mxu0
    %v1027 = vadd.f32 %v964, %v1026
    %v1028 = vand.u32 %v705, 4294901760
    %1029 = vmatmul.f32.gmra.mxu0 %v1028
    %v1030 = vpop.f32.mrf.mxu0
    %v1031 = vadd.f32 %v970, %v1030
    %v1032 = vand.u32 %v708, 4294901760
    %1033 = vmatmul.f32.gmra.mxu0 %v1032
    %v1034 = vpop.f32.mrf.mxu0
    %v1035 = vadd.f32 %v976, %v1034
    %v1036 = vand.u32 %v711, 4294901760
    %1037 = vmatmul.f32.gmra.mxu0 %v1036
    %v1038 = vpop.f32.mrf.mxu0
    %v1039 = vadd.f32 %v982, %v1038
    %v1040 = vand.u32 %v714, 4294901760
    %1041 = vmatmul.f32.gmra.mxu0 %v1040
    %v1042 = vpop.f32.mrf.mxu0
    %v1043 = vadd.f32 %v988, %v1042
    %1044 = vdwg.mxu0
    %1045 = vmatpush.msra.mxu0 0.0
    %1046 = vmatpush.msra.mxu0 0.0
    %1047 = vmatpush.msra.mxu0 0.0
    %1048 = vmatpush.msra.mxu0 0.0
    %1049 = vmatpush.msra.mxu0 0.0
    %1050 = vmatpush.msra.mxu0 0.0
    %1051 = vmatpush.msra.mxu0 0.0
    %1052 = vmatpush.msra.mxu0 0.0
    %1053 = vmatpush.msra.mxu0 0.0
    %1054 = vmatpush.msra.mxu0 0.0
    %1055 = vmatpush.msra.mxu0 0.0
    %1056 = vmatpush.msra.mxu0 0.0
    %1057 = vmatpush.msra.mxu0 0.0
    %1058 = vmatpush.msra.mxu0 0.0
    %v1059 = vand.u32 %v718, 4294901760
    %1060 = vmatpush.msra.mxu0 %v1059
    %v1061 = vand.u32 %v690, 4294901760
    %1062 = vmatpush.msra.mxu0 %v1061
    %v1063 = vand.u32 %v693, 4294901760
    %1064 = vmatmul.f32.gmra.mxu0 %v1063
    %v1065 = vpop.f32.mrf.mxu0
    %v1066 = vadd.f32 %v1015, %v1065
    %v1067 = vand.u32 %v696, 4294901760
    %1068 = vmatmul.f32.gmra.mxu0 %v1067
    %v1069 = vpop.f32.mrf.mxu0
    %v1070 = vadd.f32 %v1019, %v1069
    %v1071 = vand.u32 %v699, 4294901760
    %1072 = vmatmul.f32.gmra.mxu0 %v1071
    %v1073 = vpop.f32.mrf.mxu0
    %v1074 = vadd.f32 %v1023, %v1073
    %v1075 = vand.u32 %v702, 4294901760
    %1076 = vmatmul.f32.gmra.mxu0 %v1075
    %v1077 = vpop.f32.mrf.mxu0
    %v1078 = vadd.f32 %v1027, %v1077
    %v1079 = vand.u32 %v705, 4294901760
    %1080 = vmatmul.f32.gmra.mxu0 %v1079
    %v1081 = vpop.f32.mrf.mxu0
    %v1082 = vadd.f32 %v1031, %v1081
    %v1083 = vand.u32 %v708, 4294901760
    %1084 = vmatmul.f32.gmra.mxu0 %v1083
    %v1085 = vpop.f32.mrf.mxu0
    %v1086 = vadd.f32 %v1035, %v1085
    %v1087 = vand.u32 %v711, 4294901760
    %1088 = vmatmul.f32.gmra.mxu0 %v1087
    %v1089 = vpop.f32.mrf.mxu0
    %v1090 = vadd.f32 %v1039, %v1089
    %v1091 = vand.u32 %v714, 4294901760
    %1092 = vmatmul.f32.gmra.mxu0 %v1091
    %v1093 = vpop.f32.mrf.mxu0
    %v1094 = vadd.f32 %v1043, %v1093
    %1095 = vdwg.mxu0
    %v1096 = vmul.f32 %v1066, 2.0
    %v1097 = vmul.f32 %v1070, 2.0
    %v1098 = vmul.f32 %v1074, 2.0
    %v1099 = vmul.f32 %v1078, 2.0
    %v1100 = vmul.f32 %v1082, 2.0
    %v1101 = vmul.f32 %v1086, 2.0
    %v1102 = vmul.f32 %v1090, 2.0
    %v1103 = vmul.f32 %v1094, 2.0
    %v1104 = vadd.f32 %v486, %v1096
    %v1105 = vadd.f32 %v487, %v1097
    %v1106 = vadd.f32 %v488, %v1098
    %v1107 = vadd.f32 %v489, %v1099
    %v1108 = vadd.f32 %v490, %v1100
    %v1109 = vadd.f32 %v491, %v1101
    %v1110 = vadd.f32 %v492, %v1102
    %v1111 = vadd.f32 %v493, %v1103
    %v1112 = vsel %vm496, inf, %v1104
    %v1113 = vsel %vm496, inf, %v1105
    %v1114 = vsel %vm496, inf, %v1106
    %v1115 = vsel %vm496, inf, %v1107
    %v1116 = vsel %vm496, inf, %v1108
    %v1117 = vsel %vm496, inf, %v1109
    %v1118 = vsel %vm496, inf, %v1110
    %v1119 = vsel %vm496, inf, %v1111
    %v1120 = vsel %vm505, %v1112, inf
    %1121 = vmin.xlane.f32.xlu0 %v1120
    %v1122 = vpop.xlane.xlu0 %1121
    %v1123 = vsel %vm505, %v1113, inf
    %1124 = vmin.xlane.f32.xlu0 %v1123
    %v1125 = vpop.xlane.xlu0 %1124
    %v1126 = vsel %vm505, %v1114, inf
    %1127 = vmin.xlane.f32.xlu0 %v1126
    %v1128 = vpop.xlane.xlu0 %1127
    %v1129 = vsel %vm505, %v1115, inf
    %1130 = vmin.xlane.f32.xlu0 %v1129
    %v1131 = vpop.xlane.xlu0 %1130
    %v1132 = vsel %vm505, %v1116, inf
    %1133 = vmin.xlane.f32.xlu0 %v1132
    %v1134 = vpop.xlane.xlu0 %1133
    %v1135 = vsel %vm505, %v1117, inf
    %1136 = vmin.xlane.f32.xlu0 %v1135
    %v1137 = vpop.xlane.xlu0 %1136
    %v1138 = vsel %vm505, %v1118, inf
    %1139 = vmin.xlane.f32.xlu0 %v1138
    %v1140 = vpop.xlane.xlu0 %1139
    %v1141 = vsel %vm505, %v1119, inf
    %1142 = vmin.xlane.f32.xlu0 %v1141
    %v1143 = vpop.xlane.xlu0 %1142
    %vm1144 = vcmp.eq.f32.partialorder %v1112, %v1122
    %vm1145 = vcmp.eq.f32.partialorder %v1113, %v1125
    %vm1146 = vcmp.eq.f32.partialorder %v1114, %v1128
    %vm1147 = vcmp.eq.f32.partialorder %v1115, %v1131
    %vm1148 = vcmp.eq.f32.partialorder %v1116, %v1134
    %vm1149 = vcmp.eq.f32.partialorder %v1117, %v1137
    %vm1150 = vcmp.eq.f32.partialorder %v1118, %v1140
    %vm1151 = vcmp.eq.f32.partialorder %v1119, %v1143
    %v1152 = vsel %vm1144, %v495, 14
    %v1153 = vsel %vm1145, %v495, 14
    %v1154 = vsel %vm1146, %v495, 14
    %v1155 = vsel %vm1147, %v495, 14
    %v1156 = vsel %vm1148, %v495, 14
    %v1157 = vsel %vm1149, %v495, 14
    %v1158 = vsel %vm1150, %v495, 14
    %v1159 = vsel %vm1151, %v495, 14
    %v1160 = vsel %vm505, %v1152, 2147483647
    %v1161 = vand.u32 %v1160, 65535
    %v1162 = vshra.s32 %v1160, 16
    %v1163 = vcvt.s32.f32 %v1161
    %v1164 = vcvt.s32.f32 %v1162
    %1165 = vmin.xlane.f32.xlu0 %v1164
    %v1166 = vpop.xlane.xlu0 %1165
    %vm1167 = vcmp.eq.f32.partialorder %v1164, %v1166
    %v1168 = vsel %vm1167, %v1163, inf
    %1169 = vmin.xlane.f32.xlu0 %v1168
    %v1170 = vpop.xlane.xlu0 %1169
    %v1171 = vcvt.f32.s32 %v1170
    %v1172 = vcvt.f32.s32 %v1166
    %v1173 = vshll.u32 %v1172, 16
    %v1174 = vadd.s32 %v1173, %v1171
    %v1175 = vsel %vm505, %v1153, 2147483647
    %v1176 = vand.u32 %v1175, 65535
    %v1177 = vshra.s32 %v1175, 16
    %v1178 = vcvt.s32.f32 %v1176
    %v1179 = vcvt.s32.f32 %v1177
    %1180 = vmin.xlane.f32.xlu0 %v1179
    %v1181 = vpop.xlane.xlu0 %1180
    %vm1182 = vcmp.eq.f32.partialorder %v1179, %v1181
    %v1183 = vsel %vm1182, %v1178, inf
    %1184 = vmin.xlane.f32.xlu0 %v1183
    %v1185 = vpop.xlane.xlu0 %1184
    %v1186 = vcvt.f32.s32 %v1185
    %v1187 = vcvt.f32.s32 %v1181
    %v1188 = vshll.u32 %v1187, 16
    %v1189 = vadd.s32 %v1188, %v1186
    %v1190 = vsel %vm505, %v1154, 2147483647
    %v1191 = vand.u32 %v1190, 65535
    %v1192 = vshra.s32 %v1190, 16
    %v1193 = vcvt.s32.f32 %v1191
    %v1194 = vcvt.s32.f32 %v1192
    %1195 = vmin.xlane.f32.xlu0 %v1194
    %v1196 = vpop.xlane.xlu0 %1195
    %vm1197 = vcmp.eq.f32.partialorder %v1194, %v1196
    %v1198 = vsel %vm1197, %v1193, inf
    %1199 = vmin.xlane.f32.xlu0 %v1198
    %v1200 = vpop.xlane.xlu0 %1199
    %v1201 = vcvt.f32.s32 %v1200
    %v1202 = vcvt.f32.s32 %v1196
    %v1203 = vshll.u32 %v1202, 16
    %v1204 = vadd.s32 %v1203, %v1201
    %v1205 = vsel %vm505, %v1155, 2147483647
    %v1206 = vand.u32 %v1205, 65535
    %v1207 = vshra.s32 %v1205, 16
    %v1208 = vcvt.s32.f32 %v1206
    %v1209 = vcvt.s32.f32 %v1207
    %1210 = vmin.xlane.f32.xlu0 %v1209
    %v1211 = vpop.xlane.xlu0 %1210
    %vm1212 = vcmp.eq.f32.partialorder %v1209, %v1211
    %v1213 = vsel %vm1212, %v1208, inf
    %1214 = vmin.xlane.f32.xlu0 %v1213
    %v1215 = vpop.xlane.xlu0 %1214
    %v1216 = vcvt.f32.s32 %v1215
    %v1217 = vcvt.f32.s32 %v1211
    %v1218 = vshll.u32 %v1217, 16
    %v1219 = vadd.s32 %v1218, %v1216
    %v1220 = vsel %vm505, %v1156, 2147483647
    %v1221 = vand.u32 %v1220, 65535
    %v1222 = vshra.s32 %v1220, 16
    %v1223 = vcvt.s32.f32 %v1221
    %v1224 = vcvt.s32.f32 %v1222
    %1225 = vmin.xlane.f32.xlu0 %v1224
    %v1226 = vpop.xlane.xlu0 %1225
    %vm1227 = vcmp.eq.f32.partialorder %v1224, %v1226
    %v1228 = vsel %vm1227, %v1223, inf
    %1229 = vmin.xlane.f32.xlu0 %v1228
    %v1230 = vpop.xlane.xlu0 %1229
    %v1231 = vcvt.f32.s32 %v1230
    %v1232 = vcvt.f32.s32 %v1226
    %v1233 = vshll.u32 %v1232, 16
    %v1234 = vadd.s32 %v1233, %v1231
    %v1235 = vsel %vm505, %v1157, 2147483647
    %v1236 = vand.u32 %v1235, 65535
    %v1237 = vshra.s32 %v1235, 16
    %v1238 = vcvt.s32.f32 %v1236
    %v1239 = vcvt.s32.f32 %v1237
    %1240 = vmin.xlane.f32.xlu0 %v1239
    %v1241 = vpop.xlane.xlu0 %1240
    %vm1242 = vcmp.eq.f32.partialorder %v1239, %v1241
    %v1243 = vsel %vm1242, %v1238, inf
    %1244 = vmin.xlane.f32.xlu0 %v1243
    %v1245 = vpop.xlane.xlu0 %1244
    %v1246 = vcvt.f32.s32 %v1245
    %v1247 = vcvt.f32.s32 %v1241
    %v1248 = vshll.u32 %v1247, 16
    %v1249 = vadd.s32 %v1248, %v1246
    %v1250 = vsel %vm505, %v1158, 2147483647
    %v1251 = vand.u32 %v1250, 65535
    %v1252 = vshra.s32 %v1250, 16
    %v1253 = vcvt.s32.f32 %v1251
    %v1254 = vcvt.s32.f32 %v1252
    %1255 = vmin.xlane.f32.xlu0 %v1254
    %v1256 = vpop.xlane.xlu0 %1255
    %vm1257 = vcmp.eq.f32.partialorder %v1254, %v1256
    %v1258 = vsel %vm1257, %v1253, inf
    %1259 = vmin.xlane.f32.xlu0 %v1258
    %v1260 = vpop.xlane.xlu0 %1259
    %v1261 = vcvt.f32.s32 %v1260
    %v1262 = vcvt.f32.s32 %v1256
    %v1263 = vshll.u32 %v1262, 16
    %v1264 = vadd.s32 %v1263, %v1261
    %v1265 = vsel %vm505, %v1159, 2147483647
    %v1266 = vand.u32 %v1265, 65535
    %v1267 = vshra.s32 %v1265, 16
    %v1268 = vcvt.s32.f32 %v1266
    %v1269 = vcvt.s32.f32 %v1267
    %1270 = vmin.xlane.f32.xlu0 %v1269
    %v1271 = vpop.xlane.xlu0 %1270
    %vm1272 = vcmp.eq.f32.partialorder %v1269, %v1271
    %v1273 = vsel %vm1272, %v1268, inf
    %1274 = vmin.xlane.f32.xlu0 %v1273
    %v1275 = vpop.xlane.xlu0 %1274
    %v1276 = vcvt.f32.s32 %v1275
    %v1277 = vcvt.f32.s32 %v1271
    %v1278 = vshll.u32 %v1277, 16
    %v1279 = vadd.s32 %v1278, %v1276
    %vm1280 = vcmp.eq.s32.totalorder %v495, %v1174
    %vm1281 = vcmp.eq.s32.totalorder %v495, %v1189
    %vm1282 = vcmp.eq.s32.totalorder %v495, %v1204
    %vm1283 = vcmp.eq.s32.totalorder %v495, %v1219
    %vm1284 = vcmp.eq.s32.totalorder %v495, %v1234
    %vm1285 = vcmp.eq.s32.totalorder %v495, %v1249
    %vm1286 = vcmp.eq.s32.totalorder %v495, %v1264
    %vm1287 = vcmp.eq.s32.totalorder %v495, %v1279
    %v1288 = vsel %vm1280, 1, 0
    %v1289 = vsel %vm1281, 1, 0
    %v1290 = vsel %vm1282, 1, 0
    %v1291 = vsel %vm1283, 1, 0
    %v1292 = vsel %vm1284, 1, 0
    %v1293 = vsel %vm1285, 1, 0
    %v1294 = vsel %vm1286, 1, 0
    %v1295 = vsel %vm1287, 1, 0
    %v1296 = vcvt.s32.f32 %v1288
    %v1297 = vcvt.s32.f32 %v1289
    %v1298 = vcvt.s32.f32 %v1290
    %v1299 = vcvt.s32.f32 %v1291
    %v1300 = vcvt.s32.f32 %v1292
    %v1301 = vcvt.s32.f32 %v1293
    %v1302 = vcvt.s32.f32 %v1294
    %v1303 = vcvt.s32.f32 %v1295
    %v1304 = vadd.f32 %v682, %v1296
    %v1305 = vadd.f32 %v683, %v1297
    %v1306 = vadd.f32 %v684, %v1298
    %v1307 = vadd.f32 %v685, %v1299
    %v1308 = vadd.f32 %v686, %v1300
    %v1309 = vadd.f32 %v687, %v1301
    %v1310 = vadd.f32 %v688, %v1302
    %v1311 = vadd.f32 %v689, %v1303
    %v1312 = vld [vmem:[#allocation7] sm:$0xff]
    %v1313 = vld [vmem:[#allocation7 + $0x8] sm:$0xff]
    %v1314 = vld [vmem:[#allocation7 + $0x10] sm:$0x3f]
    %v1315 = vld [vmem:[#allocation7 + $0x18] sm:$0x3f]
    %v1317 = vsel %vm505, %v1304, 0
    %v1320 = vsel %vm505, %v1305, 0
    %v1323 = vsel %vm505, %v1306, 0
    %v1326 = vsel %vm505, %v1307, 0
    %v1329 = vsel %vm505, %v1308, 0
    %v1332 = vsel %vm505, %v1309, 0
    %v1335 = vsel %vm505, %v1310, 0
    %v1338 = vsel %vm505, %v1311, 0
    %v1341 = vsel %vm716, %v1314, 0
    %v1344 = vsel %vm716, %v1315, 0
    %1346 = vmatpush.msra.mxu0 0.0
    %1347 = vmatpush.msra.mxu0 0.0
    %1348 = vmatpush.msra.mxu0 0.0
    %1349 = vmatpush.msra.mxu0 0.0
    %1350 = vmatpush.msra.mxu0 0.0
    %1351 = vmatpush.msra.mxu0 0.0
    %1352 = vmatpush.msra.mxu0 0.0
    %1353 = vmatpush.msra.mxu0 0.0
    %1354 = vmatpush.msra.mxu0 0.0
    %1355 = vmatpush.msra.mxu0 0.0
    %1356 = vmatpush.msra.mxu0 0.0
    %1357 = vmatpush.msra.mxu0 0.0
    %1358 = vmatpush.msra.mxu0 0.0
    %1359 = vmatpush.msra.mxu0 0.0
    %v1360 = vand.u32 %v1341, 4294901760
    %1361 = vmatpush.msra.mxu0 %v1360
    %v1362 = vand.u32 %v1312, 4294901760
    %1363 = vmatpush.msra.mxu0 %v1362
    %v1364 = vand.u32 %v1317, 4294901760
    %v1365 = vsub.f32 %v1317, %v1364
    %v1366 = vand.u32 %v1365, 4294901760
    %v1367 = vsub.f32 %v1365, %v1366
    %v1368 = vand.u32 %v1367, 4294901760
    %1369 = vmatmul.f32.gmra.mxu0 %v1368
    %v1370 = vpop.f32.mrf.mxu0
    %v1371 = vadd.f32 0.0, %v1370
    %v1372 = vand.u32 %v1320, 4294901760
    %v1373 = vsub.f32 %v1320, %v1372
    %v1374 = vand.u32 %v1373, 4294901760
    %v1375 = vsub.f32 %v1373, %v1374
    %v1376 = vand.u32 %v1375, 4294901760
    %1377 = vmatmul.f32.gmra.mxu0 %v1376
    %v1378 = vpop.f32.mrf.mxu0
    %v1379 = vadd.f32 0.0, %v1378
    %v1380 = vand.u32 %v1323, 4294901760
    %v1381 = vsub.f32 %v1323, %v1380
    %v1382 = vand.u32 %v1381, 4294901760
    %v1383 = vsub.f32 %v1381, %v1382
    %v1384 = vand.u32 %v1383, 4294901760
    %1385 = vmatmul.f32.gmra.mxu0 %v1384
    %v1386 = vpop.f32.mrf.mxu0
    %v1387 = vadd.f32 0.0, %v1386
    %v1388 = vand.u32 %v1326, 4294901760
    %v1389 = vsub.f32 %v1326, %v1388
    %v1390 = vand.u32 %v1389, 4294901760
    %v1391 = vsub.f32 %v1389, %v1390
    %v1392 = vand.u32 %v1391, 4294901760
    %1393 = vmatmul.f32.gmra.mxu0 %v1392
    %v1394 = vpop.f32.mrf.mxu0
    %v1395 = vadd.f32 0.0, %v1394
    %v1396 = vand.u32 %v1329, 4294901760
    %v1397 = vsub.f32 %v1329, %v1396
    %v1398 = vand.u32 %v1397, 4294901760
    %v1399 = vsub.f32 %v1397, %v1398
    %v1400 = vand.u32 %v1399, 4294901760
    %1401 = vmatmul.f32.gmra.mxu0 %v1400
    %v1402 = vpop.f32.mrf.mxu0
    %v1403 = vadd.f32 0.0, %v1402
    %v1404 = vand.u32 %v1332, 4294901760
    %v1405 = vsub.f32 %v1332, %v1404
    %v1406 = vand.u32 %v1405, 4294901760
    %v1407 = vsub.f32 %v1405, %v1406
    %v1408 = vand.u32 %v1407, 4294901760
    %1409 = vmatmul.f32.gmra.mxu0 %v1408
    %v1410 = vpop.f32.mrf.mxu0
    %v1411 = vadd.f32 0.0, %v1410
    %v1412 = vand.u32 %v1335, 4294901760
    %v1413 = vsub.f32 %v1335, %v1412
    %v1414 = vand.u32 %v1413, 4294901760
    %v1415 = vsub.f32 %v1413, %v1414
    %v1416 = vand.u32 %v1415, 4294901760
    %1417 = vmatmul.f32.gmra.mxu0 %v1416
    %v1418 = vpop.f32.mrf.mxu0
    %v1419 = vadd.f32 0.0, %v1418
    %v1420 = vand.u32 %v1338, 4294901760
    %v1421 = vsub.f32 %v1338, %v1420
    %v1422 = vand.u32 %v1421, 4294901760
    %v1423 = vsub.f32 %v1421, %v1422
    %v1424 = vand.u32 %v1423, 4294901760
    %1425 = vmatmul.f32.gmra.mxu0 %v1424
    %v1426 = vpop.f32.mrf.mxu0
    %v1427 = vadd.f32 0.0, %v1426
    %1428 = vdwg.mxu0
    %1429 = vmatpush.msra.mxu0 0.0
    %1430 = vmatpush.msra.mxu0 0.0
    %1431 = vmatpush.msra.mxu0 0.0
    %1432 = vmatpush.msra.mxu0 0.0
    %1433 = vmatpush.msra.mxu0 0.0
    %1434 = vmatpush.msra.mxu0 0.0
    %1435 = vmatpush.msra.mxu0 0.0
    %1436 = vmatpush.msra.mxu0 0.0
    %1437 = vmatpush.msra.mxu0 0.0
    %1438 = vmatpush.msra.mxu0 0.0
    %1439 = vmatpush.msra.mxu0 0.0
    %1440 = vmatpush.msra.mxu0 0.0
    %1441 = vmatpush.msra.mxu0 0.0
    %1442 = vmatpush.msra.mxu0 0.0
    %v1443 = vand.u32 %v1341, 4294901760
    %v1444 = vsub.f32 %v1341, %v1443
    %v1445 = vand.u32 %v1444, 4294901760
    %v1446 = vsub.f32 %v1444, %v1445
    %v1447 = vand.u32 %v1446, 4294901760
    %1448 = vmatpush.msra.mxu0 %v1447
    %v1449 = vand.u32 %v1312, 4294901760
    %v1450 = vsub.f32 %v1312, %v1449
    %v1451 = vand.u32 %v1450, 4294901760
    %v1452 = vsub.f32 %v1450, %v1451
    %v1453 = vand.u32 %v1452, 4294901760
    %1454 = vmatpush.msra.mxu0 %v1453
    %v1455 = vand.u32 %v1317, 4294901760
    %1456 = vmatmul.f32.gmra.mxu0 %v1455
    %v1457 = vpop.f32.mrf.mxu0
    %v1458 = vadd.f32 %v1371, %v1457
    %v1459 = vand.u32 %v1320, 4294901760
    %1460 = vmatmul.f32.gmra.mxu0 %v1459
    %v1461 = vpop.f32.mrf.mxu0
    %v1462 = vadd.f32 %v1379, %v1461
    %v1463 = vand.u32 %v1323, 4294901760
    %1464 = vmatmul.f32.gmra.mxu0 %v1463
    %v1465 = vpop.f32.mrf.mxu0
    %v1466 = vadd.f32 %v1387, %v1465
    %v1467 = vand.u32 %v1326, 4294901760
    %1468 = vmatmul.f32.gmra.mxu0 %v1467
    %v1469 = vpop.f32.mrf.mxu0
    %v1470 = vadd.f32 %v1395, %v1469
    %v1471 = vand.u32 %v1329, 4294901760
    %1472 = vmatmul.f32.gmra.mxu0 %v1471
    %v1473 = vpop.f32.mrf.mxu0
    %v1474 = vadd.f32 %v1403, %v1473
    %v1475 = vand.u32 %v1332, 4294901760
    %1476 = vmatmul.f32.gmra.mxu0 %v1475
    %v1477 = vpop.f32.mrf.mxu0
    %v1478 = vadd.f32 %v1411, %v1477
    %v1479 = vand.u32 %v1335, 4294901760
    %1480 = vmatmul.f32.gmra.mxu0 %v1479
    %v1481 = vpop.f32.mrf.mxu0
    %v1482 = vadd.f32 %v1419, %v1481
    %v1483 = vand.u32 %v1338, 4294901760
    %1484 = vmatmul.f32.gmra.mxu0 %v1483
    %v1485 = vpop.f32.mrf.mxu0
    %v1486 = vadd.f32 %v1427, %v1485
    %1487 = vdwg.mxu0
    %1488 = vmatpush.msra.mxu0 0.0
    %1489 = vmatpush.msra.mxu0 0.0
    %1490 = vmatpush.msra.mxu0 0.0
    %1491 = vmatpush.msra.mxu0 0.0
    %1492 = vmatpush.msra.mxu0 0.0
    %1493 = vmatpush.msra.mxu0 0.0
    %1494 = vmatpush.msra.mxu0 0.0
    %1495 = vmatpush.msra.mxu0 0.0
    %1496 = vmatpush.msra.mxu0 0.0
    %1497 = vmatpush.msra.mxu0 0.0
    %1498 = vmatpush.msra.mxu0 0.0
    %1499 = vmatpush.msra.mxu0 0.0
    %1500 = vmatpush.msra.mxu0 0.0
    %1501 = vmatpush.msra.mxu0 0.0
    %v1502 = vand.u32 %v1341, 4294901760
    %v1503 = vsub.f32 %v1341, %v1502
    %1504 = vmatpush.msra.mxu0 %v1503
    %v1505 = vand.u32 %v1312, 4294901760
    %v1506 = vsub.f32 %v1312, %v1505
    %1507 = vmatpush.msra.mxu0 %v1506
    %v1508 = vand.u32 %v1317, 4294901760
    %v1509 = vsub.f32 %v1317, %v1508
    %1510 = vmatmul.f32.gmra.mxu0 %v1509
    %v1511 = vpop.f32.mrf.mxu0
    %v1512 = vadd.f32 %v1458, %v1511
    %v1513 = vand.u32 %v1320, 4294901760
    %v1514 = vsub.f32 %v1320, %v1513
    %1515 = vmatmul.f32.gmra.mxu0 %v1514
    %v1516 = vpop.f32.mrf.mxu0
    %v1517 = vadd.f32 %v1462, %v1516
    %v1518 = vand.u32 %v1323, 4294901760
    %v1519 = vsub.f32 %v1323, %v1518
    %1520 = vmatmul.f32.gmra.mxu0 %v1519
    %v1521 = vpop.f32.mrf.mxu0
    %v1522 = vadd.f32 %v1466, %v1521
    %v1523 = vand.u32 %v1326, 4294901760
    %v1524 = vsub.f32 %v1326, %v1523
    %1525 = vmatmul.f32.gmra.mxu0 %v1524
    %v1526 = vpop.f32.mrf.mxu0
    %v1527 = vadd.f32 %v1470, %v1526
    %v1528 = vand.u32 %v1329, 4294901760
    %v1529 = vsub.f32 %v1329, %v1528
    %1530 = vmatmul.f32.gmra.mxu0 %v1529
    %v1531 = vpop.f32.mrf.mxu0
    %v1532 = vadd.f32 %v1474, %v1531
    %v1533 = vand.u32 %v1332, 4294901760
    %v1534 = vsub.f32 %v1332, %v1533
    %1535 = vmatmul.f32.gmra.mxu0 %v1534
    %v1536 = vpop.f32.mrf.mxu0
    %v1537 = vadd.f32 %v1478, %v1536
    %v1538 = vand.u32 %v1335, 4294901760
    %v1539 = vsub.f32 %v1335, %v1538
    %1540 = vmatmul.f32.gmra.mxu0 %v1539
    %v1541 = vpop.f32.mrf.mxu0
    %v1542 = vadd.f32 %v1482, %v1541
    %v1543 = vand.u32 %v1338, 4294901760
    %v1544 = vsub.f32 %v1338, %v1543
    %1545 = vmatmul.f32.gmra.mxu0 %v1544
    %v1546 = vpop.f32.mrf.mxu0
    %v1547 = vadd.f32 %v1486, %v1546
    %1548 = vdwg.mxu0
    %1549 = vmatpush.msra.mxu0 0.0
    %1550 = vmatpush.msra.mxu0 0.0
    %1551 = vmatpush.msra.mxu0 0.0
    %1552 = vmatpush.msra.mxu0 0.0
    %1553 = vmatpush.msra.mxu0 0.0
    %1554 = vmatpush.msra.mxu0 0.0
    %1555 = vmatpush.msra.mxu0 0.0
    %1556 = vmatpush.msra.mxu0 0.0
    %1557 = vmatpush.msra.mxu0 0.0
    %1558 = vmatpush.msra.mxu0 0.0
    %1559 = vmatpush.msra.mxu0 0.0
    %1560 = vmatpush.msra.mxu0 0.0
    %1561 = vmatpush.msra.mxu0 0.0
    %1562 = vmatpush.msra.mxu0 0.0
    %v1563 = vand.u32 %v1341, 4294901760
    %1564 = vmatpush.msra.mxu0 %v1563
    %v1565 = vand.u32 %v1312, 4294901760
    %1566 = vmatpush.msra.mxu0 %v1565
    %v1567 = vand.u32 %v1317, 4294901760
    %v1568 = vsub.f32 %v1317, %v1567
    %v1569 = vand.u32 %v1568, 4294901760
    %1570 = vmatmul.f32.gmra.mxu0 %v1569
    %v1571 = vpop.f32.mrf.mxu0
    %v1572 = vadd.f32 %v1512, %v1571
    %v1573 = vand.u32 %v1320, 4294901760
    %v1574 = vsub.f32 %v1320, %v1573
    %v1575 = vand.u32 %v1574, 4294901760
    %1576 = vmatmul.f32.gmra.mxu0 %v1575
    %v1577 = vpop.f32.mrf.mxu0
    %v1578 = vadd.f32 %v1517, %v1577
    %v1579 = vand.u32 %v1323, 4294901760
    %v1580 = vsub.f32 %v1323, %v1579
    %v1581 = vand.u32 %v1580, 4294901760
    %1582 = vmatmul.f32.gmra.mxu0 %v1581
    %v1583 = vpop.f32.mrf.mxu0
    %v1584 = vadd.f32 %v1522, %v1583
    %v1585 = vand.u32 %v1326, 4294901760
    %v1586 = vsub.f32 %v1326, %v1585
    %v1587 = vand.u32 %v1586, 4294901760
    %1588 = vmatmul.f32.gmra.mxu0 %v1587
    %v1589 = vpop.f32.mrf.mxu0
    %v1590 = vadd.f32 %v1527, %v1589
    %v1591 = vand.u32 %v1329, 4294901760
    %v1592 = vsub.f32 %v1329, %v1591
    %v1593 = vand.u32 %v1592, 4294901760
    %1594 = vmatmul.f32.gmra.mxu0 %v1593
    %v1595 = vpop.f32.mrf.mxu0
    %v1596 = vadd.f32 %v1532, %v1595
    %v1597 = vand.u32 %v1332, 4294901760
    %v1598 = vsub.f32 %v1332, %v1597
    %v1599 = vand.u32 %v1598, 4294901760
    %1600 = vmatmul.f32.gmra.mxu0 %v1599
    %v1601 = vpop.f32.mrf.mxu0
    %v1602 = vadd.f32 %v1537, %v1601
    %v1603 = vand.u32 %v1335, 4294901760
    %v1604 = vsub.f32 %v1335, %v1603
    %v1605 = vand.u32 %v1604, 4294901760
    %1606 = vmatmul.f32.gmra.mxu0 %v1605
    %v1607 = vpop.f32.mrf.mxu0
    %v1608 = vadd.f32 %v1542, %v1607
    %v1609 = vand.u32 %v1338, 4294901760
    %v1610 = vsub.f32 %v1338, %v1609
    %v1611 = vand.u32 %v1610, 4294901760
    %1612 = vmatmul.f32.gmra.mxu0 %v1611
    %v1613 = vpop.f32.mrf.mxu0
    %v1614 = vadd.f32 %v1547, %v1613
    %1615 = vdwg.mxu0
    %1616 = vmatpush.msra.mxu0 0.0
    %1617 = vmatpush.msra.mxu0 0.0
    %1618 = vmatpush.msra.mxu0 0.0
    %1619 = vmatpush.msra.mxu0 0.0
    %1620 = vmatpush.msra.mxu0 0.0
    %1621 = vmatpush.msra.mxu0 0.0
    %1622 = vmatpush.msra.mxu0 0.0
    %1623 = vmatpush.msra.mxu0 0.0
    %1624 = vmatpush.msra.mxu0 0.0
    %1625 = vmatpush.msra.mxu0 0.0
    %1626 = vmatpush.msra.mxu0 0.0
    %1627 = vmatpush.msra.mxu0 0.0
    %1628 = vmatpush.msra.mxu0 0.0
    %1629 = vmatpush.msra.mxu0 0.0
    %v1630 = vand.u32 %v1341, 4294901760
    %v1631 = vsub.f32 %v1341, %v1630
    %v1632 = vand.u32 %v1631, 4294901760
    %1633 = vmatpush.msra.mxu0 %v1632
    %v1634 = vand.u32 %v1312, 4294901760
    %v1635 = vsub.f32 %v1312, %v1634
    %v1636 = vand.u32 %v1635, 4294901760
    %1637 = vmatpush.msra.mxu0 %v1636
    %v1638 = vand.u32 %v1317, 4294901760
    %1639 = vmatmul.f32.gmra.mxu0 %v1638
    %v1640 = vpop.f32.mrf.mxu0
    %v1641 = vadd.f32 %v1572, %v1640
    %v1642 = vand.u32 %v1320, 4294901760
    %1643 = vmatmul.f32.gmra.mxu0 %v1642
    %v1644 = vpop.f32.mrf.mxu0
    %v1645 = vadd.f32 %v1578, %v1644
    %v1646 = vand.u32 %v1323, 4294901760
    %1647 = vmatmul.f32.gmra.mxu0 %v1646
    %v1648 = vpop.f32.mrf.mxu0
    %v1649 = vadd.f32 %v1584, %v1648
    %v1650 = vand.u32 %v1326, 4294901760
    %1651 = vmatmul.f32.gmra.mxu0 %v1650
    %v1652 = vpop.f32.mrf.mxu0
    %v1653 = vadd.f32 %v1590, %v1652
    %v1654 = vand.u32 %v1329, 4294901760
    %1655 = vmatmul.f32.gmra.mxu0 %v1654
    %v1656 = vpop.f32.mrf.mxu0
    %v1657 = vadd.f32 %v1596, %v1656
    %v1658 = vand.u32 %v1332, 4294901760
    %1659 = vmatmul.f32.gmra.mxu0 %v1658
    %v1660 = vpop.f32.mrf.mxu0
    %v1661 = vadd.f32 %v1602, %v1660
    %v1662 = vand.u32 %v1335, 4294901760
    %1663 = vmatmul.f32.gmra.mxu0 %v1662
    %v1664 = vpop.f32.mrf.mxu0
    %v1665 = vadd.f32 %v1608, %v1664
    %v1666 = vand.u32 %v1338, 4294901760
    %1667 = vmatmul.f32.gmra.mxu0 %v1666
    %v1668 = vpop.f32.mrf.mxu0
    %v1669 = vadd.f32 %v1614, %v1668
    %1670 = vdwg.mxu0
    %1671 = vmatpush.msra.mxu0 0.0
    %1672 = vmatpush.msra.mxu0 0.0
    %1673 = vmatpush.msra.mxu0 0.0
    %1674 = vmatpush.msra.mxu0 0.0
    %1675 = vmatpush.msra.mxu0 0.0
    %1676 = vmatpush.msra.mxu0 0.0
    %1677 = vmatpush.msra.mxu0 0.0
    %1678 = vmatpush.msra.mxu0 0.0
    %1679 = vmatpush.msra.mxu0 0.0
    %1680 = vmatpush.msra.mxu0 0.0
    %1681 = vmatpush.msra.mxu0 0.0
    %1682 = vmatpush.msra.mxu0 0.0
    %1683 = vmatpush.msra.mxu0 0.0
    %1684 = vmatpush.msra.mxu0 0.0
    %v1685 = vand.u32 %v1341, 4294901760
    %1686 = vmatpush.msra.mxu0 %v1685
    %v1687 = vand.u32 %v1312, 4294901760
    %1688 = vmatpush.msra.mxu0 %v1687
    %v1689 = vand.u32 %v1317, 4294901760
    %1690 = vmatmul.f32.gmra.mxu0 %v1689
    %v1691 = vpop.f32.mrf.mxu0
    %v1692 = vadd.f32 %v1641, %v1691
    %v1693 = vand.u32 %v1320, 4294901760
    %1694 = vmatmul.f32.gmra.mxu0 %v1693
    %v1695 = vpop.f32.mrf.mxu0
    %v1696 = vadd.f32 %v1645, %v1695
    %v1697 = vand.u32 %v1323, 4294901760
    %1698 = vmatmul.f32.gmra.mxu0 %v1697
    %v1699 = vpop.f32.mrf.mxu0
    %v1700 = vadd.f32 %v1649, %v1699
    %v1701 = vand.u32 %v1326, 4294901760
    %1702 = vmatmul.f32.gmra.mxu0 %v1701
    %v1703 = vpop.f32.mrf.mxu0
    %v1704 = vadd.f32 %v1653, %v1703
    %v1705 = vand.u32 %v1329, 4294901760
    %1706 = vmatmul.f32.gmra.mxu0 %v1705
    %v1707 = vpop.f32.mrf.mxu0
    %v1708 = vadd.f32 %v1657, %v1707
    %v1709 = vand.u32 %v1332, 4294901760
    %1710 = vmatmul.f32.gmra.mxu0 %v1709
    %v1711 = vpop.f32.mrf.mxu0
    %v1712 = vadd.f32 %v1661, %v1711
    %v1713 = vand.u32 %v1335, 4294901760
    %1714 = vmatmul.f32.gmra.mxu0 %v1713
    %v1715 = vpop.f32.mrf.mxu0
    %v1716 = vadd.f32 %v1665, %v1715
    %v1717 = vand.u32 %v1338, 4294901760
    %1718 = vmatmul.f32.gmra.mxu0 %v1717
    %v1719 = vpop.f32.mrf.mxu0
    %v1720 = vadd.f32 %v1669, %v1719
    %1721 = vdwg.mxu0
    %1722 = vmatpush.msra.mxu0 0.0
    %1723 = vmatpush.msra.mxu0 0.0
    %1724 = vmatpush.msra.mxu0 0.0
    %1725 = vmatpush.msra.mxu0 0.0
    %1726 = vmatpush.msra.mxu0 0.0
    %1727 = vmatpush.msra.mxu0 0.0
    %1728 = vmatpush.msra.mxu0 0.0
    %1729 = vmatpush.msra.mxu0 0.0
    %1730 = vmatpush.msra.mxu0 0.0
    %1731 = vmatpush.msra.mxu0 0.0
    %1732 = vmatpush.msra.mxu0 0.0
    %1733 = vmatpush.msra.mxu0 0.0
    %1734 = vmatpush.msra.mxu0 0.0
    %1735 = vmatpush.msra.mxu0 0.0
    %v1736 = vand.u32 %v1344, 4294901760
    %1737 = vmatpush.msra.mxu0 %v1736
    %v1738 = vand.u32 %v1313, 4294901760
    %1739 = vmatpush.msra.mxu0 %v1738
    %v1740 = vand.u32 %v1317, 4294901760
    %v1741 = vsub.f32 %v1317, %v1740
    %v1742 = vand.u32 %v1741, 4294901760
    %v1743 = vsub.f32 %v1741, %v1742
    %v1744 = vand.u32 %v1743, 4294901760
    %1745 = vmatmul.f32.gmra.mxu0 %v1744
    %v1746 = vpop.f32.mrf.mxu0
    %v1747 = vadd.f32 0.0, %v1746
    %v1748 = vand.u32 %v1320, 4294901760
    %v1749 = vsub.f32 %v1320, %v1748
    %v1750 = vand.u32 %v1749, 4294901760
    %v1751 = vsub.f32 %v1749, %v1750
    %v1752 = vand.u32 %v1751, 4294901760
    %1753 = vmatmul.f32.gmra.mxu0 %v1752
    %v1754 = vpop.f32.mrf.mxu0
    %v1755 = vadd.f32 0.0, %v1754
    %v1756 = vand.u32 %v1323, 4294901760
    %v1757 = vsub.f32 %v1323, %v1756
    %v1758 = vand.u32 %v1757, 4294901760
    %v1759 = vsub.f32 %v1757, %v1758
    %v1760 = vand.u32 %v1759, 4294901760
    %1761 = vmatmul.f32.gmra.mxu0 %v1760
    %v1762 = vpop.f32.mrf.mxu0
    %v1763 = vadd.f32 0.0, %v1762
    %v1764 = vand.u32 %v1326, 4294901760
    %v1765 = vsub.f32 %v1326, %v1764
    %v1766 = vand.u32 %v1765, 4294901760
    %v1767 = vsub.f32 %v1765, %v1766
    %v1768 = vand.u32 %v1767, 4294901760
    %1769 = vmatmul.f32.gmra.mxu0 %v1768
    %v1770 = vpop.f32.mrf.mxu0
    %v1771 = vadd.f32 0.0, %v1770
    %v1772 = vand.u32 %v1329, 4294901760
    %v1773 = vsub.f32 %v1329, %v1772
    %v1774 = vand.u32 %v1773, 4294901760
    %v1775 = vsub.f32 %v1773, %v1774
    %v1776 = vand.u32 %v1775, 4294901760
    %1777 = vmatmul.f32.gmra.mxu0 %v1776
    %v1778 = vpop.f32.mrf.mxu0
    %v1779 = vadd.f32 0.0, %v1778
    %v1780 = vand.u32 %v1332, 4294901760
    %v1781 = vsub.f32 %v1332, %v1780
    %v1782 = vand.u32 %v1781, 4294901760
    %v1783 = vsub.f32 %v1781, %v1782
    %v1784 = vand.u32 %v1783, 4294901760
    %1785 = vmatmul.f32.gmra.mxu0 %v1784
    %v1786 = vpop.f32.mrf.mxu0
    %v1787 = vadd.f32 0.0, %v1786
    %v1788 = vand.u32 %v1335, 4294901760
    %v1789 = vsub.f32 %v1335, %v1788
    %v1790 = vand.u32 %v1789, 4294901760
    %v1791 = vsub.f32 %v1789, %v1790
    %v1792 = vand.u32 %v1791, 4294901760
    %1793 = vmatmul.f32.gmra.mxu0 %v1792
    %v1794 = vpop.f32.mrf.mxu0
    %v1795 = vadd.f32 0.0, %v1794
    %v1796 = vand.u32 %v1338, 4294901760
    %v1797 = vsub.f32 %v1338, %v1796
    %v1798 = vand.u32 %v1797, 4294901760
    %v1799 = vsub.f32 %v1797, %v1798
    %v1800 = vand.u32 %v1799, 4294901760
    %1801 = vmatmul.f32.gmra.mxu0 %v1800
    %v1802 = vpop.f32.mrf.mxu0
    %v1803 = vadd.f32 0.0, %v1802
    %1804 = vdwg.mxu0
    %1805 = vmatpush.msra.mxu0 0.0
    %1806 = vmatpush.msra.mxu0 0.0
    %1807 = vmatpush.msra.mxu0 0.0
    %1808 = vmatpush.msra.mxu0 0.0
    %1809 = vmatpush.msra.mxu0 0.0
    %1810 = vmatpush.msra.mxu0 0.0
    %1811 = vmatpush.msra.mxu0 0.0
    %1812 = vmatpush.msra.mxu0 0.0
    %1813 = vmatpush.msra.mxu0 0.0
    %1814 = vmatpush.msra.mxu0 0.0
    %1815 = vmatpush.msra.mxu0 0.0
    %1816 = vmatpush.msra.mxu0 0.0
    %1817 = vmatpush.msra.mxu0 0.0
    %1818 = vmatpush.msra.mxu0 0.0
    %v1819 = vand.u32 %v1344, 4294901760
    %v1820 = vsub.f32 %v1344, %v1819
    %v1821 = vand.u32 %v1820, 4294901760
    %v1822 = vsub.f32 %v1820, %v1821
    %v1823 = vand.u32 %v1822, 4294901760
    %1824 = vmatpush.msra.mxu0 %v1823
    %v1825 = vand.u32 %v1313, 4294901760
    %v1826 = vsub.f32 %v1313, %v1825
    %v1827 = vand.u32 %v1826, 4294901760
    %v1828 = vsub.f32 %v1826, %v1827
    %v1829 = vand.u32 %v1828, 4294901760
    %1830 = vmatpush.msra.mxu0 %v1829
    %v1831 = vand.u32 %v1317, 4294901760
    %1832 = vmatmul.f32.gmra.mxu0 %v1831
    %v1833 = vpop.f32.mrf.mxu0
    %v1834 = vadd.f32 %v1747, %v1833
    %v1835 = vand.u32 %v1320, 4294901760
    %1836 = vmatmul.f32.gmra.mxu0 %v1835
    %v1837 = vpop.f32.mrf.mxu0
    %v1838 = vadd.f32 %v1755, %v1837
    %v1839 = vand.u32 %v1323, 4294901760
    %1840 = vmatmul.f32.gmra.mxu0 %v1839
    %v1841 = vpop.f32.mrf.mxu0
    %v1842 = vadd.f32 %v1763, %v1841
    %v1843 = vand.u32 %v1326, 4294901760
    %1844 = vmatmul.f32.gmra.mxu0 %v1843
    %v1845 = vpop.f32.mrf.mxu0
    %v1846 = vadd.f32 %v1771, %v1845
    %v1847 = vand.u32 %v1329, 4294901760
    %1848 = vmatmul.f32.gmra.mxu0 %v1847
    %v1849 = vpop.f32.mrf.mxu0
    %v1850 = vadd.f32 %v1779, %v1849
    %v1851 = vand.u32 %v1332, 4294901760
    %1852 = vmatmul.f32.gmra.mxu0 %v1851
    %v1853 = vpop.f32.mrf.mxu0
    %v1854 = vadd.f32 %v1787, %v1853
    %v1855 = vand.u32 %v1335, 4294901760
    %1856 = vmatmul.f32.gmra.mxu0 %v1855
    %v1857 = vpop.f32.mrf.mxu0
    %v1858 = vadd.f32 %v1795, %v1857
    %v1859 = vand.u32 %v1338, 4294901760
    %1860 = vmatmul.f32.gmra.mxu0 %v1859
    %v1861 = vpop.f32.mrf.mxu0
    %v1862 = vadd.f32 %v1803, %v1861
    %1863 = vdwg.mxu0
    %1864 = vmatpush.msra.mxu0 0.0
    %1865 = vmatpush.msra.mxu0 0.0
    %1866 = vmatpush.msra.mxu0 0.0
    %1867 = vmatpush.msra.mxu0 0.0
    %1868 = vmatpush.msra.mxu0 0.0
    %1869 = vmatpush.msra.mxu0 0.0
    %1870 = vmatpush.msra.mxu0 0.0
    %1871 = vmatpush.msra.mxu0 0.0
    %1872 = vmatpush.msra.mxu0 0.0
    %1873 = vmatpush.msra.mxu0 0.0
    %1874 = vmatpush.msra.mxu0 0.0
    %1875 = vmatpush.msra.mxu0 0.0
    %1876 = vmatpush.msra.mxu0 0.0
    %1877 = vmatpush.msra.mxu0 0.0
    %v1878 = vand.u32 %v1344, 4294901760
    %v1879 = vsub.f32 %v1344, %v1878
    %1880 = vmatpush.msra.mxu0 %v1879
    %v1881 = vand.u32 %v1313, 4294901760
    %v1882 = vsub.f32 %v1313, %v1881
    %1883 = vmatpush.msra.mxu0 %v1882
    %v1884 = vand.u32 %v1317, 4294901760
    %v1885 = vsub.f32 %v1317, %v1884
    %1886 = vmatmul.f32.gmra.mxu0 %v1885
    %v1887 = vpop.f32.mrf.mxu0
    %v1888 = vadd.f32 %v1834, %v1887
    %v1889 = vand.u32 %v1320, 4294901760
    %v1890 = vsub.f32 %v1320, %v1889
    %1891 = vmatmul.f32.gmra.mxu0 %v1890
    %v1892 = vpop.f32.mrf.mxu0
    %v1893 = vadd.f32 %v1838, %v1892
    %v1894 = vand.u32 %v1323, 4294901760
    %v1895 = vsub.f32 %v1323, %v1894
    %1896 = vmatmul.f32.gmra.mxu0 %v1895
    %v1897 = vpop.f32.mrf.mxu0
    %v1898 = vadd.f32 %v1842, %v1897
    %v1899 = vand.u32 %v1326, 4294901760
    %v1900 = vsub.f32 %v1326, %v1899
    %1901 = vmatmul.f32.gmra.mxu0 %v1900
    %v1902 = vpop.f32.mrf.mxu0
    %v1903 = vadd.f32 %v1846, %v1902
    %v1904 = vand.u32 %v1329, 4294901760
    %v1905 = vsub.f32 %v1329, %v1904
    %1906 = vmatmul.f32.gmra.mxu0 %v1905
    %v1907 = vpop.f32.mrf.mxu0
    %v1908 = vadd.f32 %v1850, %v1907
    %v1909 = vand.u32 %v1332, 4294901760
    %v1910 = vsub.f32 %v1332, %v1909
    %1911 = vmatmul.f32.gmra.mxu0 %v1910
    %v1912 = vpop.f32.mrf.mxu0
    %v1913 = vadd.f32 %v1854, %v1912
    %v1914 = vand.u32 %v1335, 4294901760
    %v1915 = vsub.f32 %v1335, %v1914
    %1916 = vmatmul.f32.gmra.mxu0 %v1915
    %v1917 = vpop.f32.mrf.mxu0
    %v1918 = vadd.f32 %v1858, %v1917
    %v1919 = vand.u32 %v1338, 4294901760
    %v1920 = vsub.f32 %v1338, %v1919
    %1921 = vmatmul.f32.gmra.mxu0 %v1920
    %v1922 = vpop.f32.mrf.mxu0
    %v1923 = vadd.f32 %v1862, %v1922
    %1924 = vdwg.mxu0
    %1925 = vmatpush.msra.mxu0 0.0
    %1926 = vmatpush.msra.mxu0 0.0
    %1927 = vmatpush.msra.mxu0 0.0
    %1928 = vmatpush.msra.mxu0 0.0
    %1929 = vmatpush.msra.mxu0 0.0
    %1930 = vmatpush.msra.mxu0 0.0
    %1931 = vmatpush.msra.mxu0 0.0
    %1932 = vmatpush.msra.mxu0 0.0
    %1933 = vmatpush.msra.mxu0 0.0
    %1934 = vmatpush.msra.mxu0 0.0
    %1935 = vmatpush.msra.mxu0 0.0
    %1936 = vmatpush.msra.mxu0 0.0
    %1937 = vmatpush.msra.mxu0 0.0
    %1938 = vmatpush.msra.mxu0 0.0
    %v1939 = vand.u32 %v1344, 4294901760
    %1940 = vmatpush.msra.mxu0 %v1939
    %v1941 = vand.u32 %v1313, 4294901760
    %1942 = vmatpush.msra.mxu0 %v1941
    %v1943 = vand.u32 %v1317, 4294901760
    %v1944 = vsub.f32 %v1317, %v1943
    %v1945 = vand.u32 %v1944, 4294901760
    %1946 = vmatmul.f32.gmra.mxu0 %v1945
    %v1947 = vpop.f32.mrf.mxu0
    %v1948 = vadd.f32 %v1888, %v1947
    %v1949 = vand.u32 %v1320, 4294901760
    %v1950 = vsub.f32 %v1320, %v1949
    %v1951 = vand.u32 %v1950, 4294901760
    %1952 = vmatmul.f32.gmra.mxu0 %v1951
    %v1953 = vpop.f32.mrf.mxu0
    %v1954 = vadd.f32 %v1893, %v1953
    %v1955 = vand.u32 %v1323, 4294901760
    %v1956 = vsub.f32 %v1323, %v1955
    %v1957 = vand.u32 %v1956, 4294901760
    %1958 = vmatmul.f32.gmra.mxu0 %v1957
    %v1959 = vpop.f32.mrf.mxu0
    %v1960 = vadd.f32 %v1898, %v1959
    %v1961 = vand.u32 %v1326, 4294901760
    %v1962 = vsub.f32 %v1326, %v1961
    %v1963 = vand.u32 %v1962, 4294901760
    %1964 = vmatmul.f32.gmra.mxu0 %v1963
    %v1965 = vpop.f32.mrf.mxu0
    %v1966 = vadd.f32 %v1903, %v1965
    %v1967 = vand.u32 %v1329, 4294901760
    %v1968 = vsub.f32 %v1329, %v1967
    %v1969 = vand.u32 %v1968, 4294901760
    %1970 = vmatmul.f32.gmra.mxu0 %v1969
    %v1971 = vpop.f32.mrf.mxu0
    %v1972 = vadd.f32 %v1908, %v1971
    %v1973 = vand.u32 %v1332, 4294901760
    %v1974 = vsub.f32 %v1332, %v1973
    %v1975 = vand.u32 %v1974, 4294901760
    %1976 = vmatmul.f32.gmra.mxu0 %v1975
    %v1977 = vpop.f32.mrf.mxu0
    %v1978 = vadd.f32 %v1913, %v1977
    %v1979 = vand.u32 %v1335, 4294901760
    %v1980 = vsub.f32 %v1335, %v1979
    %v1981 = vand.u32 %v1980, 4294901760
    %1982 = vmatmul.f32.gmra.mxu0 %v1981
    %v1983 = vpop.f32.mrf.mxu0
    %v1984 = vadd.f32 %v1918, %v1983
    %v1985 = vand.u32 %v1338, 4294901760
    %v1986 = vsub.f32 %v1338, %v1985
    %v1987 = vand.u32 %v1986, 4294901760
    %1988 = vmatmul.f32.gmra.mxu0 %v1987
    %v1989 = vpop.f32.mrf.mxu0
    %v1990 = vadd.f32 %v1923, %v1989
    %1991 = vdwg.mxu0
    %1992 = vmatpush.msra.mxu0 0.0
    %1993 = vmatpush.msra.mxu0 0.0
    %1994 = vmatpush.msra.mxu0 0.0
    %1995 = vmatpush.msra.mxu0 0.0
    %1996 = vmatpush.msra.mxu0 0.0
    %1997 = vmatpush.msra.mxu0 0.0
    %1998 = vmatpush.msra.mxu0 0.0
    %1999 = vmatpush.msra.mxu0 0.0
    %2000 = vmatpush.msra.mxu0 0.0
    %2001 = vmatpush.msra.mxu0 0.0
    %2002 = vmatpush.msra.mxu0 0.0
    %2003 = vmatpush.msra.mxu0 0.0
    %2004 = vmatpush.msra.mxu0 0.0
    %2005 = vmatpush.msra.mxu0 0.0
    %v2006 = vand.u32 %v1344, 4294901760
    %v2007 = vsub.f32 %v1344, %v2006
    %v2008 = vand.u32 %v2007, 4294901760
    %2009 = vmatpush.msra.mxu0 %v2008
    %v2010 = vand.u32 %v1313, 4294901760
    %v2011 = vsub.f32 %v1313, %v2010
    %v2012 = vand.u32 %v2011, 4294901760
    %2013 = vmatpush.msra.mxu0 %v2012
    %v2014 = vand.u32 %v1317, 4294901760
    %2015 = vmatmul.f32.gmra.mxu0 %v2014
    %v2016 = vpop.f32.mrf.mxu0
    %v2017 = vadd.f32 %v1948, %v2016
    %v2018 = vand.u32 %v1320, 4294901760
    %2019 = vmatmul.f32.gmra.mxu0 %v2018
    %v2020 = vpop.f32.mrf.mxu0
    %v2021 = vadd.f32 %v1954, %v2020
    %v2022 = vand.u32 %v1323, 4294901760
    %2023 = vmatmul.f32.gmra.mxu0 %v2022
    %v2024 = vpop.f32.mrf.mxu0
    %v2025 = vadd.f32 %v1960, %v2024
    %v2026 = vand.u32 %v1326, 4294901760
    %2027 = vmatmul.f32.gmra.mxu0 %v2026
    %v2028 = vpop.f32.mrf.mxu0
    %v2029 = vadd.f32 %v1966, %v2028
    %v2030 = vand.u32 %v1329, 4294901760
    %2031 = vmatmul.f32.gmra.mxu0 %v2030
    %v2032 = vpop.f32.mrf.mxu0
    %v2033 = vadd.f32 %v1972, %v2032
    %v2034 = vand.u32 %v1332, 4294901760
    %2035 = vmatmul.f32.gmra.mxu0 %v2034
    %v2036 = vpop.f32.mrf.mxu0
    %v2037 = vadd.f32 %v1978, %v2036
    %v2038 = vand.u32 %v1335, 4294901760
    %2039 = vmatmul.f32.gmra.mxu0 %v2038
    %v2040 = vpop.f32.mrf.mxu0
    %v2041 = vadd.f32 %v1984, %v2040
    %v2042 = vand.u32 %v1338, 4294901760
    %2043 = vmatmul.f32.gmra.mxu0 %v2042
    %v2044 = vpop.f32.mrf.mxu0
    %v2045 = vadd.f32 %v1990, %v2044
    %2046 = vdwg.mxu0
    %2047 = vmatpush.msra.mxu0 0.0
    %2048 = vmatpush.msra.mxu0 0.0
    %2049 = vmatpush.msra.mxu0 0.0
    %2050 = vmatpush.msra.mxu0 0.0
    %2051 = vmatpush.msra.mxu0 0.0
    %2052 = vmatpush.msra.mxu0 0.0
    %2053 = vmatpush.msra.mxu0 0.0
    %2054 = vmatpush.msra.mxu0 0.0
    %2055 = vmatpush.msra.mxu0 0.0
    %2056 = vmatpush.msra.mxu0 0.0
    %2057 = vmatpush.msra.mxu0 0.0
    %2058 = vmatpush.msra.mxu0 0.0
    %2059 = vmatpush.msra.mxu0 0.0
    %2060 = vmatpush.msra.mxu0 0.0
    %v2061 = vand.u32 %v1344, 4294901760
    %2062 = vmatpush.msra.mxu0 %v2061
    %v2063 = vand.u32 %v1313, 4294901760
    %2064 = vmatpush.msra.mxu0 %v2063
    %v2065 = vand.u32 %v1317, 4294901760
    %2066 = vmatmul.f32.gmra.mxu0 %v2065
    %v2067 = vpop.f32.mrf.mxu0
    %v2068 = vadd.f32 %v2017, %v2067
    %v2069 = vand.u32 %v1320, 4294901760
    %2070 = vmatmul.f32.gmra.mxu0 %v2069
    %v2071 = vpop.f32.mrf.mxu0
    %v2072 = vadd.f32 %v2021, %v2071
    %v2073 = vand.u32 %v1323, 4294901760
    %2074 = vmatmul.f32.gmra.mxu0 %v2073
    %v2075 = vpop.f32.mrf.mxu0
    %v2076 = vadd.f32 %v2025, %v2075
    %v2077 = vand.u32 %v1326, 4294901760
    %2078 = vmatmul.f32.gmra.mxu0 %v2077
    %v2079 = vpop.f32.mrf.mxu0
    %v2080 = vadd.f32 %v2029, %v2079
    %v2081 = vand.u32 %v1329, 4294901760
    %2082 = vmatmul.f32.gmra.mxu0 %v2081
    %v2083 = vpop.f32.mrf.mxu0
    %v2084 = vadd.f32 %v2033, %v2083
    %v2085 = vand.u32 %v1332, 4294901760
    %2086 = vmatmul.f32.gmra.mxu0 %v2085
    %v2087 = vpop.f32.mrf.mxu0
    %v2088 = vadd.f32 %v2037, %v2087
    %v2089 = vand.u32 %v1335, 4294901760
    %2090 = vmatmul.f32.gmra.mxu0 %v2089
    %v2091 = vpop.f32.mrf.mxu0
    %v2092 = vadd.f32 %v2041, %v2091
    %v2093 = vand.u32 %v1338, 4294901760
    %2094 = vmatmul.f32.gmra.mxu0 %v2093
    %v2095 = vpop.f32.mrf.mxu0
    %v2096 = vadd.f32 %v2045, %v2095
    %2097 = vdwg.mxu0
    %2098 = vst [vmem:[#allocation10] sm:$0xff] %v1692
    %2099 = vst [vmem:[#allocation10 + $0x8] sm:$0xff] %v2068
    %2100 = vst [vmem:[#allocation10 + $0x10] sm:$0xff] %v1696
    %2101 = vst [vmem:[#allocation10 + $0x18] sm:$0xff] %v2072
    %2102 = vst [vmem:[#allocation10 + $0x20] sm:$0xff] %v1700
    %2103 = vst [vmem:[#allocation10 + $0x28] sm:$0xff] %v2076
    %2104 = vst [vmem:[#allocation10 + $0x30] sm:$0xff] %v1704
    %2105 = vst [vmem:[#allocation10 + $0x38] sm:$0xff] %v2080
    %2106 = vst [vmem:[#allocation10 + $0x40] sm:$0xff] %v1708
    %2107 = vst [vmem:[#allocation10 + $0x48] sm:$0xff] %v2084
    %2108 = vst [vmem:[#allocation10 + $0x50] sm:$0xff] %v1712
    %2109 = vst [vmem:[#allocation10 + $0x58] sm:$0xff] %v2088
    %2110 = vst [vmem:[#allocation10 + $0x60] sm:$0xff] %v1716
    %2111 = vst [vmem:[#allocation10 + $0x68] sm:$0xff] %v2092
    %2112 = vst [vmem:[#allocation10 + $0x70] sm:$0xff] %v1720
    %2113 = vst [vmem:[#allocation10 + $0x78] sm:$0xff] %v2096
    %v2114 = vlaneseq
    %v2115 = vshrl.u32 %v2114, 7
    %v2116 = vmul.u32 %v2115, 7
    %v2117 = vsub.s32 %v495, %v2116
    %vm2118 = vcmp.ge.s32.totalorder %v2117, 0
    %vm2119 = vcmp.lt.s32.totalorder %v2117, 7
    %vm2120 = vmand %vm2118, %vm2119
    %v2121 = vsel %vm2120, %v2117, 0
    %v2122 = vcvt.s32.f32 %v2121
    %v2124 = vsel %vm505, %v2122, 0
    %2126 = vmatpush.xpose.msra.mxu0 0.0
    %2127 = vmatpush.xpose.msra.mxu0 0.0
    %2128 = vmatpush.xpose.msra.mxu0 0.0
    %2129 = vmatpush.xpose.msra.mxu0 0.0
    %2130 = vmatpush.xpose.msra.mxu0 0.0
    %2131 = vmatpush.xpose.msra.mxu0 0.0
    %2132 = vmatpush.xpose.msra.mxu0 0.0
    %2133 = vmatpush.xpose.msra.mxu0 0.0
    %2134 = vmatpush.xpose.msra.mxu0 %v1338
    %2135 = vmatpush.xpose.msra.mxu0 %v1335
    %2136 = vmatpush.xpose.msra.mxu0 %v1332
    %2137 = vmatpush.xpose.msra.mxu0 %v1329
    %2138 = vmatpush.xpose.msra.mxu0 %v1326
    %2139 = vmatpush.xpose.msra.mxu0 %v1323
    %2140 = vmatpush.xpose.msra.mxu0 %v1320
    %2141 = vmatpush.xpose.msra.mxu0 %v1317
    %2142 = vmatmul.f32.gmra.mxu0 %v2124
    %v2143 = vpop.f32.mrf.mxu0
    %v2144 = vadd.f32 0.0, %v2143
    %2145 = vdwg.mxu0
    %v2146 = vcvt.f32.s32.to.zero.pseudo %v2144
    %vm2147 = vcmask 517120
    %2148 = vst.msk [vmem:[#allocation11] sm:$0x3] %vm2147, %v2146
    %v2149 = vsub.f32 %v88, %v1692
    %v2150 = vsub.f32 %v89, %v1696
    %v2151 = vsub.f32 %v90, %v1700
    %v2152 = vsub.f32 %v91, %v1704
    %v2153 = vsub.f32 %v92, %v1708
    %v2154 = vsub.f32 %v93, %v1712
    %v2155 = vsub.f32 %v94, %v1716
    %v2156 = vsub.f32 %v95, %v1720
    %v2157 = vsub.f32 %v2149, %v2068
    %v2158 = vsub.f32 %v2150, %v2072
    %v2159 = vsub.f32 %v2151, %v2076
    %v2160 = vsub.f32 %v2152, %v2080
    %v2161 = vsub.f32 %v2153, %v2084
    %v2162 = vsub.f32 %v2154, %v2088
    %v2163 = vsub.f32 %v2155, %v2092
    %v2164 = vsub.f32 %v2156, %v2096
    %v2165 = vmul.f32 %v2149, %v2149
    %v2166 = vmul.f32 %v2150, %v2150
    %v2167 = vmul.f32 %v2151, %v2151
    %v2168 = vmul.f32 %v2152, %v2152
    %v2169 = vmul.f32 %v2153, %v2153
    %v2170 = vmul.f32 %v2154, %v2154
    %v2171 = vmul.f32 %v2155, %v2155
    %v2172 = vmul.f32 %v2156, %v2156
    %2173 = vadd.xlane.f32.xlu0 %v2165
    %v2174 = vpop.xlane.xlu0 %2173
    %2175 = vadd.xlane.f32.xlu0 %v2166
    %v2176 = vpop.xlane.xlu0 %2175
    %2177 = vadd.xlane.f32.xlu0 %v2167
    %v2178 = vpop.xlane.xlu0 %2177
    %2179 = vadd.xlane.f32.xlu0 %v2168
    %v2180 = vpop.xlane.xlu0 %2179
    %2181 = vadd.xlane.f32.xlu0 %v2169
    %v2182 = vpop.xlane.xlu0 %2181
    %2183 = vadd.xlane.f32.xlu0 %v2170
    %v2184 = vpop.xlane.xlu0 %2183
    %2185 = vadd.xlane.f32.xlu0 %v2171
    %v2186 = vpop.xlane.xlu0 %2185
    %2187 = vadd.xlane.f32.xlu0 %v2172
    %v2188 = vpop.xlane.xlu0 %2187
    %v2189 = vmul.f32 %v2157, %v2157
    %v2190 = vmul.f32 %v2158, %v2158
    %v2191 = vmul.f32 %v2159, %v2159
    %v2192 = vmul.f32 %v2160, %v2160
    %v2193 = vmul.f32 %v2161, %v2161
    %v2194 = vmul.f32 %v2162, %v2162
    %v2195 = vmul.f32 %v2163, %v2163
    %v2196 = vmul.f32 %v2164, %v2164
    %2197 = vadd.xlane.f32.xlu0 %v2189
    %v2198 = vpop.xlane.xlu0 %2197
    %2199 = vadd.xlane.f32.xlu0 %v2190
    %v2200 = vpop.xlane.xlu0 %2199
    %2201 = vadd.xlane.f32.xlu0 %v2191
    %v2202 = vpop.xlane.xlu0 %2201
    %2203 = vadd.xlane.f32.xlu0 %v2192
    %v2204 = vpop.xlane.xlu0 %2203
    %2205 = vadd.xlane.f32.xlu0 %v2193
    %v2206 = vpop.xlane.xlu0 %2205
    %2207 = vadd.xlane.f32.xlu0 %v2194
    %v2208 = vpop.xlane.xlu0 %2207
    %2209 = vadd.xlane.f32.xlu0 %v2195
    %v2210 = vpop.xlane.xlu0 %2209
    %2211 = vadd.xlane.f32.xlu0 %v2196
    %v2212 = vpop.xlane.xlu0 %2211
    %v2213 = vsel %vm505, %v1304, 0.0
    %v2214 = vsel %vm505, %v1305, 0.0
    %v2215 = vadd.f32 %v2213, %v2214
    %v2216 = vsel %vm505, %v1306, 0.0
    %v2217 = vadd.f32 %v2215, %v2216
    %v2218 = vsel %vm505, %v1307, 0.0
    %v2219 = vadd.f32 %v2217, %v2218
    %v2220 = vsel %vm505, %v1308, 0.0
    %v2221 = vadd.f32 %v2219, %v2220
    %v2222 = vsel %vm505, %v1309, 0.0
    %v2223 = vadd.f32 %v2221, %v2222
    %v2224 = vsel %vm505, %v1310, 0.0
    %v2225 = vadd.f32 %v2223, %v2224
    %v2226 = vsel %vm505, %v1311, 0.0
    %v2227 = vadd.f32 %v2225, %v2226
    %v2228 = vrot.slane %v2227, 4
    %v2229 = vadd.f32 %v2227, %v2228
    %v2230 = vrot.slane %v2229, 2
    %v2231 = vadd.f32 %v2229, %v2230
    %v2232 = vrot.slane %v2231, 1
    %v2233 = vadd.f32 %v2231, %v2232
    %v2234 = vadd.f32 %v2174, %v2176
    %v2235 = vadd.f32 %v2234, %v2178
    %v2236 = vadd.f32 %v2235, %v2180
    %v2237 = vadd.f32 %v2236, %v2182
    %v2238 = vadd.f32 %v2237, %v2184
    %v2239 = vadd.f32 %v2238, %v2186
    %v2240 = vadd.f32 %v2239, %v2188
    %v2241 = vrot.slane %v2240, 4
    %v2242 = vadd.f32 %v2240, %v2241
    %v2243 = vrot.slane %v2242, 2
    %v2244 = vadd.f32 %v2242, %v2243
    %v2245 = vrot.slane %v2244, 1
    %v2246 = vadd.f32 %v2244, %v2245
    %v2247 = vadd.f32 %v2198, %v2200
    %v2248 = vadd.f32 %v2247, %v2202
    %v2249 = vadd.f32 %v2248, %v2204
    %v2250 = vadd.f32 %v2249, %v2206
    %v2251 = vadd.f32 %v2250, %v2208
    %v2252 = vadd.f32 %v2251, %v2210
    %v2253 = vadd.f32 %v2252, %v2212
    %v2254 = vrot.slane %v2253, 4
    %v2255 = vadd.f32 %v2253, %v2254
    %v2256 = vrot.slane %v2255, 2
    %v2257 = vadd.f32 %v2255, %v2256
    %v2258 = vrot.slane %v2257, 1
    %v2259 = vadd.f32 %v2257, %v2258
    %vm2260 = vcmask 106496
    %2261 = vst.msk [vmem:[#allocation13] sm:$0x1] %vm2260, %v2233
    %vm2262 = vcmask 114800
    %2263 = vst.msk [vmem:[#allocation13] sm:$0x1] %vm2262, %v2246
    %vm2264 = vcmask 123000
    %2265 = vst.msk [vmem:[#allocation13] sm:$0x1] %vm2264, %v2259
    // Predicated region
    $region38: #{tpu_custom_call.1} parent=1 // pred_check
      _
    $region39: #{tpu_custom_call.1} parent=1 // pred_check_branch
      %2267 = sbr.rel (0) target = $region41
    $region40: #{tpu_custom_call.1} parent=1 // pred_region
      %2269 = vsyncadd [#allocation4], 0
      %s2270 = sshll.u32 [#allocation10], 4
      %s2271 = int_to_ptr.vmem [resolvable:$true] %s2270
      %s2272 = sshll.u32 %s5, 4
      %s2273 = int_to_ptr.hbm [resolvable:$true] %s2272
      %2278 = dma.vmem_to_hbm [thread:$0]  %s2271, 2048, %s2273, [#allocation4], 256, 256, 16
    $region41: #{tpu_custom_call.1} parent=1 // pred_fallthru
      _
    // Predicated region
    $region42: #{tpu_custom_call.1} parent=1 // pred_check
      _
    $region43: #{tpu_custom_call.1} parent=1 // pred_check_branch
      %2280 = sbr.rel (0) target = $region45
    $region44: #{tpu_custom_call.1} parent=1 // pred_region
      %2282 = vsyncadd [#allocation12], 0
      %s2284 = sshll.u32 [#allocation11], 4
      %s2285 = int_to_ptr.vmem [resolvable:$true] %s2284
      %s2286 = sshll.u32 %s6, 4
      %s2287 = int_to_ptr.hbm [resolvable:$true] %s2286
      %2289 = dma.vmem_to_hbm [thread:$0]  %s2285, 32, %s2287, [#allocation12]
    $region45: #{tpu_custom_call.1} parent=1 // pred_fallthru
      _
    // Predicated region
    $region46: #{tpu_custom_call.1} parent=1 // pred_check
      _
    $region47: #{tpu_custom_call.1} parent=1 // pred_check_branch
      %2291 = sbr.rel (0) target = $region49
    $region48: #{tpu_custom_call.1} parent=1 // pred_region
      %2293 = vsyncadd [#allocation12], 0
      %s2295 = sshll.u32 [#allocation13], 4
      %s2296 = int_to_ptr.vmem [resolvable:$true] %s2295
      %s2297 = sshll.u32 %s7, 4
      %s2298 = int_to_ptr.hbm [resolvable:$true] %s2297
      %2300 = dma.vmem_to_hbm [thread:$0]  %s2296, 16, %s2298, [#allocation12]
    $region49: #{tpu_custom_call.1} parent=1 // pred_fallthru
      _
    // Predicated region
    $region50: #{tpu_custom_call.1} parent=1 // pred_check
      _
    $region51: #{tpu_custom_call.1} parent=1 // pred_check_branch
      %2302 = sbr.rel (0) target = $region53
    $region52: #{tpu_custom_call.1} parent=1 // pred_region
      %2304 = dma.done [#allocation4], 2048
    $region53: #{tpu_custom_call.1} parent=1 // pred_fallthru
      _
    // Predicated region
    $region54: #{tpu_custom_call.1} parent=1 // pred_check
      _
    $region55: #{tpu_custom_call.1} parent=1 // pred_check_branch
      %2306 = sbr.rel (0) target = $region57
    $region56: #{tpu_custom_call.1} parent=1 // pred_region
      %2308 = dma.done [#allocation12], 32
    $region57: #{tpu_custom_call.1} parent=1 // pred_fallthru
      _
    // Predicated region
    $region58: #{tpu_custom_call.1} parent=1 // pred_check
      _
    $region59: #{tpu_custom_call.1} parent=1 // pred_check_branch
      %2310 = sbr.rel (0) target = $region61
    $region60: #{tpu_custom_call.1} parent=1 // pred_region
      %2312 = dma.done [#allocation12], 16
    $region61: #{tpu_custom_call.1} parent=1 // pred_fallthru
      _
    %2313 = vsyncpa [#allocation3], 1
    %2314 = vsyncpa [#allocation6], 1
    %2315 = vsyncpa [#allocation9], 1
    %2316 = vsyncpa [#allocation4], 1
    %2317 = vsyncpa [#allocation12], 1

</llo_original>
